<compile_context>
chip_gen: v5e
topology: v5e:2x2
jax: 0.10.0
libtpu: 0.0.40
codegen_flags: <defaults>
</compile_context>

<pallas_src>
import functools

import jax
import jax.numpy as jnp
import numpy as np
from jax.experimental import pallas as pl
from jax.experimental.pallas import tpu as pltpu

_LANE = 128
_SUB = 8


def _round_up(x, m):
    return (x + m - 1) // m * m


def _interp_matrix(n_in, n_out):
    """Bilinear, align_corners=True interpolation matrix (numpy, trace time)."""
    if n_in == 1:
        return np.ones((n_out, 1), np.float32)
    s = np.arange(n_out, dtype=np.float64) * (n_in - 1) / (n_out - 1)
    i0 = np.clip(np.floor(s).astype(np.int64), 0, n_in - 2)
    w = (s - i0).astype(np.float32)
    m = np.zeros((n_out, n_in), np.float32)
    idx = np.arange(n_out)
    m[idx, i0] += 1.0 - w
    m[idx, i0 + 1] += w
    return m


# --------------------------- fused Pallas kernel -----------------------------

def _upconv_fused_kernel(x2_ref, up_ref, mask_ref,
                         w1_ref, b1_ref, g1_ref, be1_ref,
                         w2_ref, b2_ref, g2_ref, be2_ref,
                         o_ref, stack_ref, *,
                         wp, lw, inv_n, eps, c2_p, cup_p, cout_p):
    """Activations are (C_pad, lw) slabs: channels on sublanes, flattened
    zero-bordered padded spatial (n, hp, wp) + zero lane-tail pad on lanes."""
    mask = mask_ref[...]                       # (1, lw): 1.0 at valid pixels

    def shifted(x, off):
        # shifted[:, q] = x[:, q + off]  — XLU lane rotate, no VMEM copies.
        # Wrapped lanes can only land in border / tail-pad lanes (tail pad is
        # guaranteed >= wp+1), which are masked out and never feed a valid
        # conv output, so the wrap is harmless.
        if off == 0:
            return x
        return pltpu.roll(x, shift=(-off) % lw, axis=1)

    def conv3x3(groups, w_ref, b_ref):
        # Stack the 9 taps (x concat groups) into VMEM scratch tap-by-tap,
        # then do ONE lane-dense MXU dot; accumulation stays on the MXU.
        r = 0
        for dy in range(3):
            for dx in range(3):
                off = (dy - 1) * wp + (dx - 1)
                for x, nrows in groups:          # nrows is a multiple of 8
                    stack_ref[r:r + nrows, :] = shifted(x, off)
                    r += nrows
        return jnp.dot(w_ref[...], stack_ref[0:r, :],
                       preferred_element_type=jnp.float32) + b_ref[...]

    def bn_relu(x, g_ref, be_ref, apply_mask):
        # Training-mode BatchNorm (biased batch stats over valid pixels)
        # folded into a per-channel affine, + ReLU.
        mean = jnp.sum(x * mask, axis=1, keepdims=True) * inv_n
        xc = (x - mean) * mask
        var = jnp.sum(xc * xc, axis=1, keepdims=True) * inv_n
        a = g_ref[...] * jax.lax.rsqrt(var + eps)
        b = be_ref[...] - mean * a
        y = jnp.maximum(x * a + b, 0.0)
        return y * mask if apply_mask else y

    x2 = x2_ref[...]
    up = up_ref[...]

    # DoubleConv on the (implicit) concat [x2, up]: the stacked slab and the
    # packed conv1 weight share the torch.cat channel order, so no sublane
    # concat is ever materialized.
    y = conv3x3([(x2, c2_p), (up, cup_p)], w1_ref, b1_ref)
    y = bn_relu(y, g1_ref, be1_ref, apply_mask=True)   # re-zero conv padding
    y = conv3x3([(y, cout_p)], w2_ref, b2_ref)
    y = bn_relu(y, g2_ref, be2_ref, apply_mask=False)  # interior sliced later
    o_ref[...] = y


# --------------------------- layout helpers (XLA) ----------------------------

def _to_lane_slab(x_nchw, c_pad, lw):
    """(N,C,H,W) -> (c_pad, lw): channel-major, 3x3-conv zero border baked in,
    zero channel padding (to a sublane multiple) and zero lane-tail padding
    merged into a single final pad."""
    n, c, h, w = x_nchw.shape
    xp = jnp.pad(jnp.transpose(x_nchw, (1, 0, 2, 3)),
                 ((0, 0), (0, 0), (1, 1), (1, 1)))
    slab = xp.reshape(c, n * (h + 2) * (w + 2))
    return jnp.pad(slab, ((0, c_pad - c), (0, lw - slab.shape[1])))


def _valid_mask(n, h, w, lw):
    hp, wp = h + 2, w + 2
    m = np.zeros((n, hp, wp), np.float32)
    m[:, 1:h + 1, 1:w + 1] = 1.0
    m = m.reshape(1, n * hp * wp)
    m = np.pad(m, ((0, 0), (0, lw - n * hp * wp)))
    return jnp.asarray(m)


def _pack_conv_weight(groups, cout, cout_p):
    """groups: list of ((cout, cg, 3, 3) weight, cg_padded).  Returns the
    (cout_p, 9 * sum(cg_padded)) tap-stacked matrix matching the in-kernel
    scratch layout: tap block t = dy*3+dx holds [group0 ch, group1 ch, ...]."""
    packed = []
    for w, cg_p in groups:
        cg = w.shape[1]
        wpad = jnp.pad(w, ((0, cout_p - cout), (0, cg_p - cg), (0, 0), (0, 0)))
        packed.append(jnp.transpose(wpad, (0, 2, 3, 1)).reshape(cout_p, 9, cg_p))
    per_tap = sum(p.shape[2] for p in packed)
    return jnp.concatenate(packed, axis=2).reshape(cout_p, 9 * per_tap)


# --------------------------- UpConv forward ----------------------------------

def upconv_forward(params, x1_nchw, x2_nchw):
    n, c1, h1, w1 = x1_nchw.shape
    cup = params["up_w"].shape[0]
    cout = params["c1_w"].shape[0]

    # 1x1 'up' conv and 2x bilinear upsample (align_corners=True) commute
    # (both are linear and the interp rows sum to 1), so run the 1x1 conv on
    # the pre-upsample tensor and fold everything into one XLA einsum.
    uh = jnp.asarray(_interp_matrix(h1, 2 * h1))
    uw = jnp.asarray(_interp_matrix(w1, 2 * w1))
    wup = params["up_w"].reshape(cup, c1)
    x1u = jnp.einsum("oc,ph,qw,nchw->nopq", wup, uh, uw, x1_nchw)
    x1u = x1u + params["up_b"].reshape(1, cup, 1, 1)

    # F.pad on x2 exactly as the PyTorch code (diff_h feeds the W padding and
    # diff_w the H padding -- reproduced verbatim).
    diff_h = x1u.shape[2] - x2_nchw.shape[2]
    diff_w = x1u.shape[3] - x2_nchw.shape[3]
    x2p = jnp.pad(x2_nchw,
                  ((0, 0), (0, 0),
                   (diff_w // 2, int(diff_w / 2)),
                   (diff_h // 2, int(diff_h / 2))))
    assert x2p.shape[2:] == x1u.shape[2:], "spatial mismatch after verbatim pad"

    c2 = x2p.shape[1]
    assert params["c1_w"].shape[1] == c2 + cup

    h_out, w_out = x1u.shape[2], x1u.shape[3]
    hp, wp = h_out + 2, w_out + 2
    mp = n * hp * wp
    # Lane width: multiple of 128 with a tail pad >= wp+1 so a rolled
    # (wrapped) lane can never reach a masked-in conv output.
    lw = _round_up(mp, _LANE)
    if lw - mp < wp + 1:
        lw += _LANE

    c2_p = _round_up(c2, _SUB)
    cup_p = _round_up(cup, _SUB)
    cout_p = _round_up(cout, _SUB)

    x2s = _to_lane_slab(x2p, c2_p, lw)
    ups = _to_lane_slab(x1u, cup_p, lw)
    mask = _valid_mask(n, h_out, w_out, lw)
    n_valid = n * h_out * w_out

    # Tap-stacked weights (channel groups padded to sublane multiples).
    w1mat = _pack_conv_weight(
        [(params["c1_w"][:, :c2], c2_p), (params["c1_w"][:, c2:], cup_p)],
        cout, cout_p)
    w2mat = _pack_conv_weight([(params["c2_w"], cout_p)], cout, cout_p)

    def col(v, pad_val=0.0):
        return jnp.pad(v.reshape(-1, 1), ((0, cout_p - cout), (0, 0)),
                       constant_values=pad_val)

    b1, g1, be1 = col(params["c1_b"]), col(params["bn1_g"], 1.0), col(params["bn1_b"])
    b2, g2, be2 = col(params["c2_b"]), col(params["bn2_g"], 1.0), col(params["bn2_b"])

    inputs = (x2s, ups, mask, w1mat, b1, g1, be1, w2mat, b2, g2, be2)

    def _full_spec(a):
        nd = a.ndim
        return pl.BlockSpec(a.shape, lambda i, _nd=nd: (0,) * _nd)

    stack_rows = 9 * max(c2_p + cup_p, cout_p)

    # Explicit VMEM budget (review: v5e scoped default is only 16 MiB).
    slab_rows = c2_p + cup_p + cout_p + 1
    vmem_bytes = 4 * lw * (2 * slab_rows + stack_rows)
    vmem_limit = min(max(2 * vmem_bytes + (4 << 20), 32 << 20), 64 << 20)

    # TODO(synk): for production sizes, tile the lane axis into a 'parallel'
    # grid with a wp+1 halo + two-phase BN (bounds VMEM for v7x, restores DMA
    # pipelining, enables megacore) and feed bf16 operands to the MXU.
    out_slab = pl.pallas_call(
        functools.partial(_upconv_fused_kernel,
                          wp=wp, lw=lw,
                          inv_n=1.0 / float(n_valid), eps=1e-5,
                          c2_p=c2_p, cup_p=cup_p, cout_p=cout_p),
        out_shape=jax.ShapeDtypeStruct((cout_p, lw), jnp.float32),
        grid=(1,),
        in_specs=[_full_spec(a) for a in inputs],
        out_specs=pl.BlockSpec((cout_p, lw), lambda i: (0, 0)),
        scratch_shapes=[pltpu.VMEM((stack_rows, lw), jnp.float32)],
        compiler_params=pltpu.CompilerParams(
            dimension_semantics=("arbitrary",),
            vmem_limit_bytes=vmem_limit),
    )(*inputs)

    # Extract interior pixels and return NCHW.
    y = out_slab[:cout, :mp].reshape(cout, n, hp, wp)
    y = y[:, :, 1:h_out + 1, 1:w_out + 1]
    return jnp.transpose(y, (1, 0, 2, 3))


# --------------------------- pure-JAX reference ------------------------------

def reference_forward(params, x1_nchw, x2_nchw):
    n, c1, h1, w1 = x1_nchw.shape
    uh = jnp.asarray(_interp_matrix(h1, 2 * h1))
    uw = jnp.asarray(_interp_matrix(w1, 2 * w1))
    x1 = jnp.einsum("oh,pw,nchw->ncop", uh, uw, x1_nchw)

    def conv(x, w, b, pad):
        y = jax.lax.conv_general_dilated(
            x, w, (1, 1), pad, dimension_numbers=("NCHW", "OIHW", "NCHW"))
        return y + b.reshape(1, -1, 1, 1)

    def bn_relu(x, g, b, eps=1e-5):
        mean = jnp.mean(x, axis=(0, 2, 3), keepdims=True)
        var = jnp.mean(jnp.square(x - mean), axis=(0, 2, 3), keepdims=True)
        return jnp.maximum((x - mean) * jax.lax.rsqrt(var + eps)
                           * g.reshape(1, -1, 1, 1) + b.reshape(1, -1, 1, 1),
                           0.0)

    x1 = conv(x1, params["up_w"], params["up_b"], "VALID")
    diff_h = x1.shape[2] - x2_nchw.shape[2]
    diff_w = x1.shape[3] - x2_nchw.shape[3]
    x2 = jnp.pad(x2_nchw, ((0, 0), (0, 0),
                           (diff_w // 2, int(diff_w / 2)),
                           (diff_h // 2, int(diff_h / 2))))
    x = jnp.concatenate([x2, x1], axis=1)
    y = conv(x, params["c1_w"], params["c1_b"], "SAME")
    y = bn_relu(y, params["bn1_g"], params["bn1_b"])
    y = conv(y, params["c2_w"], params["c2_b"], "SAME")
    y = bn_relu(y, params["bn2_g"], params["bn2_b"])
    return y


# --------------------------- main --------------------------------------------

if __name__ == "__main__":
    key = jax.random.PRNGKey(0)
    in_ch, out_ch = 8, 4                 # UpConv(in_channel=8, out_channel=4)
    N, H1, W1 = 2, 8, 8                  # x1 spatial before 2x upsample
    H2, W2 = 2 * H1, 2 * W1              # skip-connection x2 spatial

    ks = jax.random.split(key, 12)
    params = {
        "up_w":  0.1 * jax.random.normal(ks[0], (out_ch, in_ch, 1, 1), jnp.float32),
        "up_b":  0.1 * jax.random.normal(ks[1], (out_ch,), jnp.float32),
        "c1_w":  0.1 * jax.random.normal(ks[2], (out_ch, in_ch, 3, 3), jnp.float32),
        "c1_b":  0.1 * jax.random.normal(ks[3], (out_ch,), jnp.float32),
        "bn1_g": 1.0 + 0.1 * jax.random.normal(ks[4], (out_ch,), jnp.float32),
        "bn1_b": 0.1 * jax.random.normal(ks[5], (out_ch,), jnp.float32),
        "c2_w":  0.1 * jax.random.normal(ks[6], (out_ch, out_ch, 3, 3), jnp.float32),
        "c2_b":  0.1 * jax.random.normal(ks[7], (out_ch,), jnp.float32),
        "bn2_g": 1.0 + 0.1 * jax.random.normal(ks[8], (out_ch,), jnp.float32),
        "bn2_b": 0.1 * jax.random.normal(ks[9], (out_ch,), jnp.float32),
    }
    x1 = jax.random.normal(ks[10], (N, in_ch, H1, W1), jnp.float32)
    x2 = jax.random.normal(ks[11], (N, in_ch - out_ch, H2, W2), jnp.float32)

    out = jax.jit(upconv_forward)(params, x1, x2)
    out = jax.block_until_ready(out)

    ref = reference_forward(params, x1, x2)
    assert out.shape == (N, out_ch, H2, W2), out.shape
    np.testing.assert_allclose(np.asarray(out), np.asarray(ref),
                               atol=1e-3, rtol=1e-3)
    print("KERNEL_OK")
</pallas_src>

<mosaic_0001>
module attributes {stable_mosaic.version = 11 : i64} {
  func.func @_upconv_fused_kernel(%arg0: i32, %arg1: memref<8x768xf32, #tpu.memory_space<vmem>>, %arg2: memref<8x768xf32, #tpu.memory_space<vmem>>, %arg3: memref<1x768xf32, #tpu.memory_space<vmem>>, %arg4: memref<8x144xf32, #tpu.memory_space<vmem>>, %arg5: memref<8x1xf32, #tpu.memory_space<vmem>>, %arg6: memref<8x1xf32, #tpu.memory_space<vmem>>, %arg7: memref<8x1xf32, #tpu.memory_space<vmem>>, %arg8: memref<8x72xf32, #tpu.memory_space<vmem>>, %arg9: memref<8x1xf32, #tpu.memory_space<vmem>>, %arg10: memref<8x1xf32, #tpu.memory_space<vmem>>, %arg11: memref<8x1xf32, #tpu.memory_space<vmem>>, %arg12: memref<8x768xf32, #tpu.memory_space<vmem>>, %arg13: memref<144x768xf32, #tpu.memory_space<vmem>>) attributes {dimension_semantics = [#tpu.dimension_semantics<arbitrary>], iteration_bounds = array<i64: 1>, scalar_prefetch = 0 : i64, scratch_operands = 1 : i64, tpu.core_type = #tpu.core_type<tc>, window_params = [{pipeline_mode = #tpu.pipeline_mode<synchronous>, transform_indices = @transform_0, window_bounds = array<i64: 8, 768>}, {pipeline_mode = #tpu.pipeline_mode<synchronous>, transform_indices = @transform_1, window_bounds = array<i64: 8, 768>}, {pipeline_mode = #tpu.pipeline_mode<synchronous>, transform_indices = @transform_2, window_bounds = array<i64: 1, 768>}, {pipeline_mode = #tpu.pipeline_mode<synchronous>, transform_indices = @transform_3, window_bounds = array<i64: 8, 144>}, {pipeline_mode = #tpu.pipeline_mode<synchronous>, transform_indices = @transform_4, window_bounds = array<i64: 8, 1>}, {pipeline_mode = #tpu.pipeline_mode<synchronous>, transform_indices = @transform_5, window_bounds = array<i64: 8, 1>}, {pipeline_mode = #tpu.pipeline_mode<synchronous>, transform_indices = @transform_6, window_bounds = array<i64: 8, 1>}, {pipeline_mode = #tpu.pipeline_mode<synchronous>, transform_indices = @transform_7, window_bounds = array<i64: 8, 72>}, {pipeline_mode = #tpu.pipeline_mode<synchronous>, transform_indices = @transform_8, window_bounds = array<i64: 8, 1>}, {pipeline_mode = #tpu.pipeline_mode<synchronous>, transform_indices = @transform_9, window_bounds = array<i64: 8, 1>}, {pipeline_mode = #tpu.pipeline_mode<synchronous>, transform_indices = @transform_10, window_bounds = array<i64: 8, 1>}, {pipeline_mode = #tpu.pipeline_mode<synchronous>, transform_indices = @transform_11, window_bounds = array<i64: 8, 768>}]} {
    %c0 = arith.constant 0 : index
    %c0_0 = arith.constant 0 : index
    %0 = vector.load %arg3[%c0, %c0_0] : memref<1x768xf32, #tpu.memory_space<vmem>>, vector<1x768xf32>
    %c0_1 = arith.constant 0 : index
    %c0_2 = arith.constant 0 : index
    %1 = vector.load %arg1[%c0_1, %c0_2] : memref<8x768xf32, #tpu.memory_space<vmem>>, vector<8x768xf32>
    %c0_3 = arith.constant 0 : index
    %c0_4 = arith.constant 0 : index
    %2 = vector.load %arg2[%c0_3, %c0_4] : memref<8x768xf32, #tpu.memory_space<vmem>>, vector<8x768xf32>
    %c19_i32 = arith.constant 19 : i32
    %3 = tpu.dynamic_rotate %1 by %c19_i32 dim 1 : vector<8x768xf32>, i32 -> vector<8x768xf32>
    %c0_5 = arith.constant 0 : index
    %c0_6 = arith.constant 0 : index
    %4 = vector.load %arg13[%c0_5, %c0_6] : memref<144x768xf32, #tpu.memory_space<vmem>>, vector<8x768xf32>
    tpu.vector_store %arg13[%c0_5, %c0_6], %3 {strides = array<i32>} : memref<144x768xf32, #tpu.memory_space<vmem>>, vector<8x768xf32>,
    %c19_i32_7 = arith.constant 19 : i32
    %5 = tpu.dynamic_rotate %2 by %c19_i32_7 dim 1 : vector<8x768xf32>, i32 -> vector<8x768xf32>
    %c8 = arith.constant 8 : index
    %c0_8 = arith.constant 0 : index
    %6 = vector.load %arg13[%c8, %c0_8] : memref<144x768xf32, #tpu.memory_space<vmem>>, vector<8x768xf32>
    tpu.vector_store %arg13[%c8, %c0_8], %5 {strides = array<i32>} : memref<144x768xf32, #tpu.memory_space<vmem>>, vector<8x768xf32>,
    %c18_i32 = arith.constant 18 : i32
    %7 = tpu.dynamic_rotate %1 by %c18_i32 dim 1 : vector<8x768xf32>, i32 -> vector<8x768xf32>
    %c16 = arith.constant 16 : index
    %c0_9 = arith.constant 0 : index
    %8 = vector.load %arg13[%c16, %c0_9] : memref<144x768xf32, #tpu.memory_space<vmem>>, vector<8x768xf32>
    tpu.vector_store %arg13[%c16, %c0_9], %7 {strides = array<i32>} : memref<144x768xf32, #tpu.memory_space<vmem>>, vector<8x768xf32>,
    %c18_i32_10 = arith.constant 18 : i32
    %9 = tpu.dynamic_rotate %2 by %c18_i32_10 dim 1 : vector<8x768xf32>, i32 -> vector<8x768xf32>
    %c24 = arith.constant 24 : index
    %c0_11 = arith.constant 0 : index
    %10 = vector.load %arg13[%c24, %c0_11] : memref<144x768xf32, #tpu.memory_space<vmem>>, vector<8x768xf32>
    tpu.vector_store %arg13[%c24, %c0_11], %9 {strides = array<i32>} : memref<144x768xf32, #tpu.memory_space<vmem>>, vector<8x768xf32>,
    %c17_i32 = arith.constant 17 : i32
    %11 = tpu.dynamic_rotate %1 by %c17_i32 dim 1 : vector<8x768xf32>, i32 -> vector<8x768xf32>
    %c32 = arith.constant 32 : index
    %c0_12 = arith.constant 0 : index
    %12 = vector.load %arg13[%c32, %c0_12] : memref<144x768xf32, #tpu.memory_space<vmem>>, vector<8x768xf32>
    tpu.vector_store %arg13[%c32, %c0_12], %11 {strides = array<i32>} : memref<144x768xf32, #tpu.memory_space<vmem>>, vector<8x768xf32>,
    %c17_i32_13 = arith.constant 17 : i32
    %13 = tpu.dynamic_rotate %2 by %c17_i32_13 dim 1 : vector<8x768xf32>, i32 -> vector<8x768xf32>
    %c40 = arith.constant 40 : index
    %c0_14 = arith.constant 0 : index
    %14 = vector.load %arg13[%c40, %c0_14] : memref<144x768xf32, #tpu.memory_space<vmem>>, vector<8x768xf32>
    tpu.vector_store %arg13[%c40, %c0_14], %13 {strides = array<i32>} : memref<144x768xf32, #tpu.memory_space<vmem>>, vector<8x768xf32>,
    %c1_i32 = arith.constant 1 : i32
    %15 = tpu.dynamic_rotate %1 by %c1_i32 dim 1 : vector<8x768xf32>, i32 -> vector<8x768xf32>
    %c48 = arith.constant 48 : index
    %c0_15 = arith.constant 0 : index
    %16 = vector.load %arg13[%c48, %c0_15] : memref<144x768xf32, #tpu.memory_space<vmem>>, vector<8x768xf32>
    tpu.vector_store %arg13[%c48, %c0_15], %15 {strides = array<i32>} : memref<144x768xf32, #tpu.memory_space<vmem>>, vector<8x768xf32>,
    %c1_i32_16 = arith.constant 1 : i32
    %17 = tpu.dynamic_rotate %2 by %c1_i32_16 dim 1 : vector<8x768xf32>, i32 -> vector<8x768xf32>
    %c56 = arith.constant 56 : index
    %c0_17 = arith.constant 0 : index
    %18 = vector.load %arg13[%c56, %c0_17] : memref<144x768xf32, #tpu.memory_space<vmem>>, vector<8x768xf32>
    tpu.vector_store %arg13[%c56, %c0_17], %17 {strides = array<i32>} : memref<144x768xf32, #tpu.memory_space<vmem>>, vector<8x768xf32>,
    %c64 = arith.constant 64 : index
    %c0_18 = arith.constant 0 : index
    %19 = vector.load %arg13[%c64, %c0_18] : memref<144x768xf32, #tpu.memory_space<vmem>>, vector<8x768xf32>
    tpu.vector_store %arg13[%c64, %c0_18], %1 {strides = array<i32>} : memref<144x768xf32, #tpu.memory_space<vmem>>, vector<8x768xf32>,
    %c72 = arith.constant 72 : index
    %c0_19 = arith.constant 0 : index
    %20 = vector.load %arg13[%c72, %c0_19] : memref<144x768xf32, #tpu.memory_space<vmem>>, vector<8x768xf32>
    tpu.vector_store %arg13[%c72, %c0_19], %2 {strides = array<i32>} : memref<144x768xf32, #tpu.memory_space<vmem>>, vector<8x768xf32>,
    %c767_i32 = arith.constant 767 : i32
    %21 = tpu.dynamic_rotate %1 by %c767_i32 dim 1 : vector<8x768xf32>, i32 -> vector<8x768xf32>
    %c80 = arith.constant 80 : index
    %c0_20 = arith.constant 0 : index
    %22 = vector.load %arg13[%c80, %c0_20] : memref<144x768xf32, #tpu.memory_space<vmem>>, vector<8x768xf32>
    tpu.vector_store %arg13[%c80, %c0_20], %21 {strides = array<i32>} : memref<144x768xf32, #tpu.memory_space<vmem>>, vector<8x768xf32>,
    %c767_i32_21 = arith.constant 767 : i32
    %23 = tpu.dynamic_rotate %2 by %c767_i32_21 dim 1 : vector<8x768xf32>, i32 -> vector<8x768xf32>
    %c88 = arith.constant 88 : index
    %c0_22 = arith.constant 0 : index
    %24 = vector.load %arg13[%c88, %c0_22] : memref<144x768xf32, #tpu.memory_space<vmem>>, vector<8x768xf32>
    tpu.vector_store %arg13[%c88, %c0_22], %23 {strides = array<i32>} : memref<144x768xf32, #tpu.memory_space<vmem>>, vector<8x768xf32>,
    %c751_i32 = arith.constant 751 : i32
    %25 = tpu.dynamic_rotate %1 by %c751_i32 dim 1 : vector<8x768xf32>, i32 -> vector<8x768xf32>
    %c96 = arith.constant 96 : index
    %c0_23 = arith.constant 0 : index
    %26 = vector.load %arg13[%c96, %c0_23] : memref<144x768xf32, #tpu.memory_space<vmem>>, vector<8x768xf32>
    tpu.vector_store %arg13[%c96, %c0_23], %25 {strides = array<i32>} : memref<144x768xf32, #tpu.memory_space<vmem>>, vector<8x768xf32>,
    %c751_i32_24 = arith.constant 751 : i32
    %27 = tpu.dynamic_rotate %2 by %c751_i32_24 dim 1 : vector<8x768xf32>, i32 -> vector<8x768xf32>
    %c104 = arith.constant 104 : index
    %c0_25 = arith.constant 0 : index
    %28 = vector.load %arg13[%c104, %c0_25] : memref<144x768xf32, #tpu.memory_space<vmem>>, vector<8x768xf32>
    tpu.vector_store %arg13[%c104, %c0_25], %27 {strides = array<i32>} : memref<144x768xf32, #tpu.memory_space<vmem>>, vector<8x768xf32>,
    %c750_i32 = arith.constant 750 : i32
    %29 = tpu.dynamic_rotate %1 by %c750_i32 dim 1 : vector<8x768xf32>, i32 -> vector<8x768xf32>
    %c112 = arith.constant 112 : index
    %c0_26 = arith.constant 0 : index
    %30 = vector.load %arg13[%c112, %c0_26] : memref<144x768xf32, #tpu.memory_space<vmem>>, vector<8x768xf32>
    tpu.vector_store %arg13[%c112, %c0_26], %29 {strides = array<i32>} : memref<144x768xf32, #tpu.memory_space<vmem>>, vector<8x768xf32>,
    %c750_i32_27 = arith.constant 750 : i32
    %31 = tpu.dynamic_rotate %2 by %c750_i32_27 dim 1 : vector<8x768xf32>, i32 -> vector<8x768xf32>
    %c120 = arith.constant 120 : index
    %c0_28 = arith.constant 0 : index
    %32 = vector.load %arg13[%c120, %c0_28] : memref<144x768xf32, #tpu.memory_space<vmem>>, vector<8x768xf32>
    tpu.vector_store %arg13[%c120, %c0_28], %31 {strides = array<i32>} : memref<144x768xf32, #tpu.memory_space<vmem>>, vector<8x768xf32>,
    %c749_i32 = arith.constant 749 : i32
    %33 = tpu.dynamic_rotate %1 by %c749_i32 dim 1 : vector<8x768xf32>, i32 -> vector<8x768xf32>
    %c128 = arith.constant 128 : index
    %c0_29 = arith.constant 0 : index
    %34 = vector.load %arg13[%c128, %c0_29] : memref<144x768xf32, #tpu.memory_space<vmem>>, vector<8x768xf32>
    tpu.vector_store %arg13[%c128, %c0_29], %33 {strides = array<i32>} : memref<144x768xf32, #tpu.memory_space<vmem>>, vector<8x768xf32>,
    %c749_i32_30 = arith.constant 749 : i32
    %35 = tpu.dynamic_rotate %2 by %c749_i32_30 dim 1 : vector<8x768xf32>, i32 -> vector<8x768xf32>
    %c136 = arith.constant 136 : index
    %c0_31 = arith.constant 0 : index
    %36 = vector.load %arg13[%c136, %c0_31] : memref<144x768xf32, #tpu.memory_space<vmem>>, vector<8x768xf32>
    tpu.vector_store %arg13[%c136, %c0_31], %35 {strides = array<i32>} : memref<144x768xf32, #tpu.memory_space<vmem>>, vector<8x768xf32>,
    %c0_32 = arith.constant 0 : index
    %c0_33 = arith.constant 0 : index
    %37 = vector.load %arg4[%c0_32, %c0_33] : memref<8x144xf32, #tpu.memory_space<vmem>>, vector<8x144xf32>
    %c0_34 = arith.constant 0 : index
    %c0_35 = arith.constant 0 : index
    %38 = vector.load %arg13[%c0_34, %c0_35] : memref<144x768xf32, #tpu.memory_space<vmem>>, vector<144x768xf32>
    %cst = arith.constant dense<0.000000e+00> : vector<8x768xf32>
    %39 = tpu.matmul %37, %38, %cst {dimension_numbers = #tpu.dot_dimension_numbers<[1], [0], [0], [1], [0, 0, 1, 1], [], []>} : vector<8x144xf32>, vector<144x768xf32>, vector<8x768xf32> -> vector<8x768xf32>
    %c0_36 = arith.constant 0 : index
    %c0_37 = arith.constant 0 : index
    %40 = vector.load %arg5[%c0_36, %c0_37] : memref<8x1xf32, #tpu.memory_space<vmem>>, vector<8x1xf32>
    %41 = vector.broadcast %40 : vector<8x1xf32> to vector<8x768xf32>
    %42 = arith.addf %39, %41 : vector<8x768xf32>
    %43 = vector.broadcast %0 : vector<1x768xf32> to vector<8x768xf32>
    %44 = arith.mulf %42, %43 : vector<8x768xf32>
    %cst_38 = arith.constant dense<0.000000e+00> : vector<8xf32>
    %45 = vector.multi_reduction <add>, %44, %cst_38 [1] : vector<8x768xf32> to vector<8xf32>
    %46 = vector.shape_cast %45 : vector<8xf32> to vector<8x1xf32>
    %cst_39 = arith.constant 0.001953125 : f32
    %47 = vector.broadcast %cst_39 : f32 to vector<8x1xf32>
    %48 = arith.mulf %46, %47 : vector<8x1xf32>
    %49 = vector.broadcast %48 : vector<8x1xf32> to vector<8x768xf32>
    %50 = arith.subf %42, %49 : vector<8x768xf32>
    %51 = vector.broadcast %0 : vector<1x768xf32> to vector<8x768xf32>
    %52 = arith.mulf %50, %51 : vector<8x768xf32>
    %53 = arith.mulf %52, %52 : vector<8x768xf32>
    %cst_40 = arith.constant dense<0.000000e+00> : vector<8xf32>
    %54 = vector.multi_reduction <add>, %53, %cst_40 [1] : vector<8x768xf32> to vector<8xf32>
    %55 = vector.shape_cast %54 : vector<8xf32> to vector<8x1xf32>
    %cst_41 = arith.constant 0.001953125 : f32
    %56 = vector.broadcast %cst_41 : f32 to vector<8x1xf32>
    %57 = arith.mulf %55, %56 : vector<8x1xf32>
    %c0_42 = arith.constant 0 : index
    %c0_43 = arith.constant 0 : index
    %58 = vector.load %arg6[%c0_42, %c0_43] : memref<8x1xf32, #tpu.memory_space<vmem>>, vector<8x1xf32>
    %cst_44 = arith.constant 9.99999974E-6 : f32
    %59 = vector.broadcast %cst_44 : f32 to vector<8x1xf32>
    %60 = arith.addf %57, %59 : vector<8x1xf32>
    %61 = math.rsqrt %60 : vector<8x1xf32>
    %62 = arith.mulf %58, %61 : vector<8x1xf32>
    %c0_45 = arith.constant 0 : index
    %c0_46 = arith.constant 0 : index
    %63 = vector.load %arg7[%c0_45, %c0_46] : memref<8x1xf32, #tpu.memory_space<vmem>>, vector<8x1xf32>
    %64 = arith.mulf %48, %62 : vector<8x1xf32>
    %65 = arith.subf %63, %64 : vector<8x1xf32>
    %66 = vector.broadcast %62 : vector<8x1xf32> to vector<8x768xf32>
    %67 = arith.mulf %42, %66 : vector<8x768xf32>
    %68 = vector.broadcast %65 : vector<8x1xf32> to vector<8x768xf32>
    %69 = arith.addf %67, %68 : vector<8x768xf32>
    %cst_47 = arith.constant 0.000000e+00 : f32
    %70 = vector.broadcast %cst_47 : f32 to vector<8x768xf32>
    %71 = arith.maximumf %69, %70 : vector<8x768xf32>
    %72 = vector.broadcast %0 : vector<1x768xf32> to vector<8x768xf32>
    %73 = arith.mulf %71, %72 : vector<8x768xf32>
    %c19_i32_48 = arith.constant 19 : i32
    %74 = tpu.dynamic_rotate %73 by %c19_i32_48 dim 1 : vector<8x768xf32>, i32 -> vector<8x768xf32>
    %c0_49 = arith.constant 0 : index
    %c0_50 = arith.constant 0 : index
    %75 = vector.load %arg13[%c0_49, %c0_50] : memref<144x768xf32, #tpu.memory_space<vmem>>, vector<8x768xf32>
    tpu.vector_store %arg13[%c0_49, %c0_50], %74 {strides = array<i32>} : memref<144x768xf32, #tpu.memory_space<vmem>>, vector<8x768xf32>,
    %c18_i32_51 = arith.constant 18 : i32
    %76 = tpu.dynamic_rotate %73 by %c18_i32_51 dim 1 : vector<8x768xf32>, i32 -> vector<8x768xf32>
    %c8_52 = arith.constant 8 : index
    %c0_53 = arith.constant 0 : index
    %77 = vector.load %arg13[%c8_52, %c0_53] : memref<144x768xf32, #tpu.memory_space<vmem>>, vector<8x768xf32>
    tpu.vector_store %arg13[%c8_52, %c0_53], %76 {strides = array<i32>} : memref<144x768xf32, #tpu.memory_space<vmem>>, vector<8x768xf32>,
    %c17_i32_54 = arith.constant 17 : i32
    %78 = tpu.dynamic_rotate %73 by %c17_i32_54 dim 1 : vector<8x768xf32>, i32 -> vector<8x768xf32>
    %c16_55 = arith.constant 16 : index
    %c0_56 = arith.constant 0 : index
    %79 = vector.load %arg13[%c16_55, %c0_56] : memref<144x768xf32, #tpu.memory_space<vmem>>, vector<8x768xf32>
    tpu.vector_store %arg13[%c16_55, %c0_56], %78 {strides = array<i32>} : memref<144x768xf32, #tpu.memory_space<vmem>>, vector<8x768xf32>,
    %c1_i32_57 = arith.constant 1 : i32
    %80 = tpu.dynamic_rotate %73 by %c1_i32_57 dim 1 : vector<8x768xf32>, i32 -> vector<8x768xf32>
    %c24_58 = arith.constant 24 : index
    %c0_59 = arith.constant 0 : index
    %81 = vector.load %arg13[%c24_58, %c0_59] : memref<144x768xf32, #tpu.memory_space<vmem>>, vector<8x768xf32>
    tpu.vector_store %arg13[%c24_58, %c0_59], %80 {strides = array<i32>} : memref<144x768xf32, #tpu.memory_space<vmem>>, vector<8x768xf32>,
    %c32_60 = arith.constant 32 : index
    %c0_61 = arith.constant 0 : index
    %82 = vector.load %arg13[%c32_60, %c0_61] : memref<144x768xf32, #tpu.memory_space<vmem>>, vector<8x768xf32>
    tpu.vector_store %arg13[%c32_60, %c0_61], %73 {strides = array<i32>} : memref<144x768xf32, #tpu.memory_space<vmem>>, vector<8x768xf32>,
    %c767_i32_62 = arith.constant 767 : i32
    %83 = tpu.dynamic_rotate %73 by %c767_i32_62 dim 1 : vector<8x768xf32>, i32 -> vector<8x768xf32>
    %c40_63 = arith.constant 40 : index
    %c0_64 = arith.constant 0 : index
    %84 = vector.load %arg13[%c40_63, %c0_64] : memref<144x768xf32, #tpu.memory_space<vmem>>, vector<8x768xf32>
    tpu.vector_store %arg13[%c40_63, %c0_64], %83 {strides = array<i32>} : memref<144x768xf32, #tpu.memory_space<vmem>>, vector<8x768xf32>,
    %c751_i32_65 = arith.constant 751 : i32
    %85 = tpu.dynamic_rotate %73 by %c751_i32_65 dim 1 : vector<8x768xf32>, i32 -> vector<8x768xf32>
    %c48_66 = arith.constant 48 : index
    %c0_67 = arith.constant 0 : index
    %86 = vector.load %arg13[%c48_66, %c0_67] : memref<144x768xf32, #tpu.memory_space<vmem>>, vector<8x768xf32>
    tpu.vector_store %arg13[%c48_66, %c0_67], %85 {strides = array<i32>} : memref<144x768xf32, #tpu.memory_space<vmem>>, vector<8x768xf32>,
    %c750_i32_68 = arith.constant 750 : i32
    %87 = tpu.dynamic_rotate %73 by %c750_i32_68 dim 1 : vector<8x768xf32>, i32 -> vector<8x768xf32>
    %c56_69 = arith.constant 56 : index
    %c0_70 = arith.constant 0 : index
    %88 = vector.load %arg13[%c56_69, %c0_70] : memref<144x768xf32, #tpu.memory_space<vmem>>, vector<8x768xf32>
    tpu.vector_store %arg13[%c56_69, %c0_70], %87 {strides = array<i32>} : memref<144x768xf32, #tpu.memory_space<vmem>>, vector<8x768xf32>,
    %c749_i32_71 = arith.constant 749 : i32
    %89 = tpu.dynamic_rotate %73 by %c749_i32_71 dim 1 : vector<8x768xf32>, i32 -> vector<8x768xf32>
    %c64_72 = arith.constant 64 : index
    %c0_73 = arith.constant 0 : index
    %90 = vector.load %arg13[%c64_72, %c0_73] : memref<144x768xf32, #tpu.memory_space<vmem>>, vector<8x768xf32>
    tpu.vector_store %arg13[%c64_72, %c0_73], %89 {strides = array<i32>} : memref<144x768xf32, #tpu.memory_space<vmem>>, vector<8x768xf32>,
    %c0_74 = arith.constant 0 : index
    %c0_75 = arith.constant 0 : index
    %91 = vector.load %arg8[%c0_74, %c0_75] : memref<8x72xf32, #tpu.memory_space<vmem>>, vector<8x72xf32>
    %c0_76 = arith.constant 0 : index
    %c0_77 = arith.constant 0 : index
    %92 = vector.load %arg13[%c0_76, %c0_77] : memref<144x768xf32, #tpu.memory_space<vmem>>, vector<72x768xf32>
    %cst_78 = arith.constant dense<0.000000e+00> : vector<8x768xf32>
    %93 = tpu.matmul %91, %92, %cst_78 {dimension_numbers = #tpu.dot_dimension_numbers<[1], [0], [0], [1], [0, 0, 1, 1], [], []>} : vector<8x72xf32>, vector<72x768xf32>, vector<8x768xf32> -> vector<8x768xf32>
    %c0_79 = arith.constant 0 : index
    %c0_80 = arith.constant 0 : index
    %94 = vector.load %arg9[%c0_79, %c0_80] : memref<8x1xf32, #tpu.memory_space<vmem>>, vector<8x1xf32>
    %95 = vector.broadcast %94 : vector<8x1xf32> to vector<8x768xf32>
    %96 = arith.addf %93, %95 : vector<8x768xf32>
    %97 = vector.broadcast %0 : vector<1x768xf32> to vector<8x768xf32>
    %98 = arith.mulf %96, %97 : vector<8x768xf32>
    %cst_81 = arith.constant dense<0.000000e+00> : vector<8xf32>
    %99 = vector.multi_reduction <add>, %98, %cst_81 [1] : vector<8x768xf32> to vector<8xf32>
    %100 = vector.shape_cast %99 : vector<8xf32> to vector<8x1xf32>
    %cst_82 = arith.constant 0.001953125 : f32
    %101 = vector.broadcast %cst_82 : f32 to vector<8x1xf32>
    %102 = arith.mulf %100, %101 : vector<8x1xf32>
    %103 = vector.broadcast %102 : vector<8x1xf32> to vector<8x768xf32>
    %104 = arith.subf %96, %103 : vector<8x768xf32>
    %105 = vector.broadcast %0 : vector<1x768xf32> to vector<8x768xf32>
    %106 = arith.mulf %104, %105 : vector<8x768xf32>
    %107 = arith.mulf %106, %106 : vector<8x768xf32>
    %cst_83 = arith.constant dense<0.000000e+00> : vector<8xf32>
    %108 = vector.multi_reduction <add>, %107, %cst_83 [1] : vector<8x768xf32> to vector<8xf32>
    %109 = vector.shape_cast %108 : vector<8xf32> to vector<8x1xf32>
    %cst_84 = arith.constant 0.001953125 : f32
    %110 = vector.broadcast %cst_84 : f32 to vector<8x1xf32>
    %111 = arith.mulf %109, %110 : vector<8x1xf32>
    %c0_85 = arith.constant 0 : index
    %c0_86 = arith.constant 0 : index
    %112 = vector.load %arg10[%c0_85, %c0_86] : memref<8x1xf32, #tpu.memory_space<vmem>>, vector<8x1xf32>
    %cst_87 = arith.constant 9.99999974E-6 : f32
    %113 = vector.broadcast %cst_87 : f32 to vector<8x1xf32>
    %114 = arith.addf %111, %113 : vector<8x1xf32>
    %115 = math.rsqrt %114 : vector<8x1xf32>
    %116 = arith.mulf %112, %115 : vector<8x1xf32>
    %c0_88 = arith.constant 0 : index
    %c0_89 = arith.constant 0 : index
    %117 = vector.load %arg11[%c0_88, %c0_89] : memref<8x1xf32, #tpu.memory_space<vmem>>, vector<8x1xf32>
    %118 = arith.mulf %102, %116 : vector<8x1xf32>
    %119 = arith.subf %117, %118 : vector<8x1xf32>
    %120 = vector.broadcast %116 : vector<8x1xf32> to vector<8x768xf32>
    %121 = arith.mulf %96, %120 : vector<8x768xf32>
    %122 = vector.broadcast %119 : vector<8x1xf32> to vector<8x768xf32>
    %123 = arith.addf %121, %122 : vector<8x768xf32>
    %cst_90 = arith.constant 0.000000e+00 : f32
    %124 = vector.broadcast %cst_90 : f32 to vector<8x768xf32>
    %125 = arith.maximumf %123, %124 : vector<8x768xf32>
    %c0_91 = arith.constant 0 : index
    %c0_92 = arith.constant 0 : index
    %126 = vector.load %arg12[%c0_91, %c0_92] : memref<8x768xf32, #tpu.memory_space<vmem>>, vector<8x768xf32>
    tpu.vector_store %arg12[%c0_91, %c0_92], %125 {strides = array<i32>} : memref<8x768xf32, #tpu.memory_space<vmem>>, vector<8x768xf32>,
    return
  }
  func.func @transform_0(%arg0: i32) -> (i32, i32) {
    %c0_i32 = arith.constant 0 : i32
    %c0_i32_0 = arith.constant 0 : i32
    %c0_i32_1 = arith.constant 0 : i32
    return %c0_i32, %c0_i32_0 : i32, i32
  }
  func.func @transform_1(%arg0: i32) -> (i32, i32) {
    %c0_i32 = arith.constant 0 : i32
    %c0_i32_0 = arith.constant 0 : i32
    %c0_i32_1 = arith.constant 0 : i32
    return %c0_i32, %c0_i32_0 : i32, i32
  }
  func.func @transform_2(%arg0: i32) -> (i32, i32) {
    %c0_i32 = arith.constant 0 : i32
    %c0_i32_0 = arith.constant 0 : i32
    %c0_i32_1 = arith.constant 0 : i32
    return %c0_i32, %c0_i32_0 : i32, i32
  }
  func.func @transform_3(%arg0: i32) -> (i32, i32) {
    %c0_i32 = arith.constant 0 : i32
    %c0_i32_0 = arith.constant 0 : i32
    %c0_i32_1 = arith.constant 0 : i32
    return %c0_i32, %c0_i32_0 : i32, i32
  }
  func.func @transform_4(%arg0: i32) -> (i32, i32) {
    %c0_i32 = arith.constant 0 : i32
    %c0_i32_0 = arith.constant 0 : i32
    %c0_i32_1 = arith.constant 0 : i32
    return %c0_i32, %c0_i32_0 : i32, i32
  }
  func.func @transform_5(%arg0: i32) -> (i32, i32) {
    %c0_i32 = arith.constant 0 : i32
    %c0_i32_0 = arith.constant 0 : i32
    %c0_i32_1 = arith.constant 0 : i32
    return %c0_i32, %c0_i32_0 : i32, i32
  }
  func.func @transform_6(%arg0: i32) -> (i32, i32) {
    %c0_i32 = arith.constant 0 : i32
    %c0_i32_0 = arith.constant 0 : i32
    %c0_i32_1 = arith.constant 0 : i32
    return %c0_i32, %c0_i32_0 : i32, i32
  }
  func.func @transform_7(%arg0: i32) -> (i32, i32) {
    %c0_i32 = arith.constant 0 : i32
    %c0_i32_0 = arith.constant 0 : i32
    %c0_i32_1 = arith.constant 0 : i32
    return %c0_i32, %c0_i32_0 : i32, i32
  }
  func.func @transform_8(%arg0: i32) -> (i32, i32) {
    %c0_i32 = arith.constant 0 : i32
    %c0_i32_0 = arith.constant 0 : i32
    %c0_i32_1 = arith.constant 0 : i32
    return %c0_i32, %c0_i32_0 : i32, i32
  }
  func.func @transform_9(%arg0: i32) -> (i32, i32) {
    %c0_i32 = arith.constant 0 : i32
    %c0_i32_0 = arith.constant 0 : i32
    %c0_i32_1 = arith.constant 0 : i32
    return %c0_i32, %c0_i32_0 : i32, i32
  }
  func.func @transform_10(%arg0: i32) -> (i32, i32) {
    %c0_i32 = arith.constant 0 : i32
    %c0_i32_0 = arith.constant 0 : i32
    %c0_i32_1 = arith.constant 0 : i32
    return %c0_i32, %c0_i32_0 : i32, i32
  }
  func.func @transform_11(%arg0: i32) -> (i32, i32) {
    %c0_i32 = arith.constant 0 : i32
    %c0_i32_0 = arith.constant 0 : i32
    %c0_i32_1 = arith.constant 0 : i32
    return %c0_i32, %c0_i32_0 : i32, i32
  }
}

</mosaic_0001>

<llo_original>
// kernel: upconv_forward.1
$region0: #{upconv_forward.1}
  #allocation0 [shape = 'u32[]', space=smem, size = 0x4, offset = 0x4, fixed_abs, tag = 'smem constant byte address 0x4 - core index']
  #allocation1 [shape = 'u32[72,128]{1,0:T(1,128)}', space=vmem, size = 0x9000, scoped, tag = 'internal scratch']
  #allocation2 [shape = 'f32[144,768]{1,0:T(8,128)}', space=vmem, size = 0x6c000, scoped, tag = 'scratch operand']
  %s0 = inlined_call_operand.vmem [shape: f32[8,768], index: 0, kind: input, shape index: {}]
  %s1 = inlined_call_operand.vmem [shape: f32[8,768], index: 1, kind: input, shape index: {}]
  %s2 = inlined_call_operand.vmem [shape: f32[1,768], index: 2, kind: input, shape index: {}]
  %s3 = inlined_call_operand.vmem [shape: f32[8,144], index: 3, kind: input, shape index: {}]
  %s4 = inlined_call_operand.vmem [shape: f32[8,1], index: 4, kind: input, shape index: {}]
  %s5 = inlined_call_operand.vmem [shape: f32[8,1], index: 5, kind: input, shape index: {}]
  %s6 = inlined_call_operand.vmem [shape: f32[8,1], index: 6, kind: input, shape index: {}]
  %s7 = inlined_call_operand.vmem [shape: f32[8,72], index: 7, kind: input, shape index: {}]
  %s8 = inlined_call_operand.vmem [shape: f32[8,1], index: 8, kind: input, shape index: {}]
  %s9 = inlined_call_operand.vmem [shape: f32[8,1], index: 9, kind: input, shape index: {}]
  %s10 = inlined_call_operand.vmem [shape: f32[8,1], index: 10, kind: input, shape index: {}]
  %s11 = inlined_call_operand.vmem [shape: f32[8,768], index: 11, kind: output, shape index: {}]
  %s12 = sld [smem:[#allocation0]]
  $region54: #{upconv_forward.1} parent=0
    _
  %s14 = ssub.s32 1, %s12
  %s15 = scalar_select 0, %s14, %s12
  // Predicated region
  $region2: #{upconv_forward.1} parent=0 // pred_check
    _
  $region3: #{upconv_forward.1} parent=0 // pred_check_branch
    %17 = sbr.rel (0) target = $region5
  $region4: #{upconv_forward.1} parent=0 // pred_region
    _
  $region5: #{upconv_forward.1} parent=0 // pred_fallthru
    _
  // Predicated region
  $region6: #{upconv_forward.1} parent=0 // pred_check
    _
  $region7: #{upconv_forward.1} parent=0 // pred_check_branch
    %19 = sbr.rel (0) target = $region9
  $region8: #{upconv_forward.1} parent=0 // pred_region
    _
  $region9: #{upconv_forward.1} parent=0 // pred_fallthru
    _
  // Predicated region
  $region10: #{upconv_forward.1} parent=0 // pred_check
    _
  $region11: #{upconv_forward.1} parent=0 // pred_check_branch
    %21 = sbr.rel (0) target = $region13
  $region12: #{upconv_forward.1} parent=0 // pred_region
    _
  $region13: #{upconv_forward.1} parent=0 // pred_fallthru
    _
  // Predicated region
  $region14: #{upconv_forward.1} parent=0 // pred_check
    _
  $region15: #{upconv_forward.1} parent=0 // pred_check_branch
    %23 = sbr.rel (0) target = $region17
  $region16: #{upconv_forward.1} parent=0 // pred_region
    _
  $region17: #{upconv_forward.1} parent=0 // pred_fallthru
    _
  // Predicated region
  $region18: #{upconv_forward.1} parent=0 // pred_check
    _
  $region19: #{upconv_forward.1} parent=0 // pred_check_branch
    %25 = sbr.rel (0) target = $region21
  $region20: #{upconv_forward.1} parent=0 // pred_region
    _
  $region21: #{upconv_forward.1} parent=0 // pred_fallthru
    _
  // Predicated region
  $region22: #{upconv_forward.1} parent=0 // pred_check
    _
  $region23: #{upconv_forward.1} parent=0 // pred_check_branch
    %27 = sbr.rel (0) target = $region25
  $region24: #{upconv_forward.1} parent=0 // pred_region
    _
  $region25: #{upconv_forward.1} parent=0 // pred_fallthru
    _
  // Predicated region
  $region26: #{upconv_forward.1} parent=0 // pred_check
    _
  $region27: #{upconv_forward.1} parent=0 // pred_check_branch
    %29 = sbr.rel (0) target = $region29
  $region28: #{upconv_forward.1} parent=0 // pred_region
    _
  $region29: #{upconv_forward.1} parent=0 // pred_fallthru
    _
  // Predicated region
  $region30: #{upconv_forward.1} parent=0 // pred_check
    _
  $region31: #{upconv_forward.1} parent=0 // pred_check_branch
    %31 = sbr.rel (0) target = $region33
  $region32: #{upconv_forward.1} parent=0 // pred_region
    _
  $region33: #{upconv_forward.1} parent=0 // pred_fallthru
    _
  // Predicated region
  $region34: #{upconv_forward.1} parent=0 // pred_check
    _
  $region35: #{upconv_forward.1} parent=0 // pred_check_branch
    %33 = sbr.rel (0) target = $region37
  $region36: #{upconv_forward.1} parent=0 // pred_region
    _
  $region37: #{upconv_forward.1} parent=0 // pred_fallthru
    _
  // Predicated region
  $region38: #{upconv_forward.1} parent=0 // pred_check
    _
  $region39: #{upconv_forward.1} parent=0 // pred_check_branch
    %35 = sbr.rel (0) target = $region41
  $region40: #{upconv_forward.1} parent=0 // pred_region
    _
  $region41: #{upconv_forward.1} parent=0 // pred_fallthru
    _
  // Predicated region
  $region42: #{upconv_forward.1} parent=0 // pred_check
    _
  $region43: #{upconv_forward.1} parent=0 // pred_check_branch
    %37 = sbr.rel (0) target = $region45
  $region44: #{upconv_forward.1} parent=0 // pred_region
    _
  $region45: #{upconv_forward.1} parent=0 // pred_fallthru
    _
  %v38 = vld [vmem:[%s2] sm:$0x3f]
  %v39 = vld [vmem:[%s0] sm:$0xff]
  %v40 = vld [vmem:[%s0 + $0x8] sm:$0xff]
  %v41 = vld [vmem:[%s0 + $0x10] sm:$0xff]
  %v42 = vld [vmem:[%s0 + $0x18] sm:$0xff]
  %v43 = vld [vmem:[%s0 + $0x20] sm:$0xff]
  %v44 = vld [vmem:[%s0 + $0x28] sm:$0xff]
  %v45 = vld [vmem:[%s1] sm:$0xff]
  %v46 = vld [vmem:[%s1 + $0x8] sm:$0xff]
  %v47 = vld [vmem:[%s1 + $0x10] sm:$0xff]
  %v48 = vld [vmem:[%s1 + $0x18] sm:$0xff]
  %v49 = vld [vmem:[%s1 + $0x20] sm:$0xff]
  %v50 = vld [vmem:[%s1 + $0x28] sm:$0xff]
  %51 = vrot.lane.b32.xlu0 %v39, 19
  %v52 = vpop.permute.xlu0 %51
  %53 = vrot.lane.b32.xlu0 %v40, 19
  %v54 = vpop.permute.xlu0 %53
  %55 = vrot.lane.b32.xlu0 %v41, 19
  %v56 = vpop.permute.xlu0 %55
  %57 = vrot.lane.b32.xlu0 %v42, 19
  %v58 = vpop.permute.xlu0 %57
  %59 = vrot.lane.b32.xlu0 %v43, 19
  %v60 = vpop.permute.xlu0 %59
  %61 = vrot.lane.b32.xlu0 %v44, 19
  %v62 = vpop.permute.xlu0 %61
  %v63 = vlaneseq
  %v64 = vand.u32 %v63, 127
  %vm65 = vcmp.lt.s32.totalorder %v64, 19
  %v66 = vsel %vm65, %v60, %v62
  %v67 = vsel %vm65, %v58, %v60
  %v68 = vsel %vm65, %v56, %v58
  %v69 = vsel %vm65, %v54, %v56
  %v70 = vsel %vm65, %v52, %v54
  %v71 = vsel %vm65, %v62, %v52
  %72 = vst [vmem:[#allocation2] sm:$0xff] %v71
  %73 = vst [vmem:[#allocation2 + $0x8] sm:$0xff] %v70
  %74 = vst [vmem:[#allocation2 + $0x10] sm:$0xff] %v69
  %75 = vst [vmem:[#allocation2 + $0x18] sm:$0xff] %v68
  %76 = vst [vmem:[#allocation2 + $0x20] sm:$0xff] %v67
  %77 = vst [vmem:[#allocation2 + $0x28] sm:$0xff] %v66
  %78 = vrot.lane.b32.xlu0 %v45, 19
  %v79 = vpop.permute.xlu0 %78
  %80 = vrot.lane.b32.xlu0 %v46, 19
  %v81 = vpop.permute.xlu0 %80
  %82 = vrot.lane.b32.xlu0 %v47, 19
  %v83 = vpop.permute.xlu0 %82
  %84 = vrot.lane.b32.xlu0 %v48, 19
  %v85 = vpop.permute.xlu0 %84
  %86 = vrot.lane.b32.xlu0 %v49, 19
  %v87 = vpop.permute.xlu0 %86
  %88 = vrot.lane.b32.xlu0 %v50, 19
  %v89 = vpop.permute.xlu0 %88
  %v90 = vsel %vm65, %v87, %v89
  %v91 = vsel %vm65, %v85, %v87
  %v92 = vsel %vm65, %v83, %v85
  %v93 = vsel %vm65, %v81, %v83
  %v94 = vsel %vm65, %v79, %v81
  %v95 = vsel %vm65, %v89, %v79
  %96 = vst [vmem:[#allocation2 + $0x30] sm:$0xff] %v95
  %97 = vst [vmem:[#allocation2 + $0x38] sm:$0xff] %v94
  %98 = vst [vmem:[#allocation2 + $0x40] sm:$0xff] %v93
  %99 = vst [vmem:[#allocation2 + $0x48] sm:$0xff] %v92
  %100 = vst [vmem:[#allocation2 + $0x50] sm:$0xff] %v91
  %101 = vst [vmem:[#allocation2 + $0x58] sm:$0xff] %v90
  %102 = vrot.lane.b32.xlu0 %v39, 18
  %v103 = vpop.permute.xlu0 %102
  %104 = vrot.lane.b32.xlu0 %v40, 18
  %v105 = vpop.permute.xlu0 %104
  %106 = vrot.lane.b32.xlu0 %v41, 18
  %v107 = vpop.permute.xlu0 %106
  %108 = vrot.lane.b32.xlu0 %v42, 18
  %v109 = vpop.permute.xlu0 %108
  %110 = vrot.lane.b32.xlu0 %v43, 18
  %v111 = vpop.permute.xlu0 %110
  %112 = vrot.lane.b32.xlu0 %v44, 18
  %v113 = vpop.permute.xlu0 %112
  %vm114 = vcmp.lt.s32.totalorder %v64, 18
  %v115 = vsel %vm114, %v111, %v113
  %v116 = vsel %vm114, %v109, %v111
  %v117 = vsel %vm114, %v107, %v109
  %v118 = vsel %vm114, %v105, %v107
  %v119 = vsel %vm114, %v103, %v105
  %v120 = vsel %vm114, %v113, %v103
  %121 = vst [vmem:[#allocation2 + $0x60] sm:$0xff] %v120
  %122 = vst [vmem:[#allocation2 + $0x68] sm:$0xff] %v119
  %123 = vst [vmem:[#allocation2 + $0x70] sm:$0xff] %v118
  %124 = vst [vmem:[#allocation2 + $0x78] sm:$0xff] %v117
  %125 = vst [vmem:[#allocation2 + $0x80] sm:$0xff] %v116
  %126 = vst [vmem:[#allocation2 + $0x88] sm:$0xff] %v115
  %127 = vrot.lane.b32.xlu0 %v45, 18
  %v128 = vpop.permute.xlu0 %127
  %129 = vrot.lane.b32.xlu0 %v46, 18
  %v130 = vpop.permute.xlu0 %129
  %131 = vrot.lane.b32.xlu0 %v47, 18
  %v132 = vpop.permute.xlu0 %131
  %133 = vrot.lane.b32.xlu0 %v48, 18
  %v134 = vpop.permute.xlu0 %133
  %135 = vrot.lane.b32.xlu0 %v49, 18
  %v136 = vpop.permute.xlu0 %135
  %137 = vrot.lane.b32.xlu0 %v50, 18
  %v138 = vpop.permute.xlu0 %137
  %v139 = vsel %vm114, %v136, %v138
  %v140 = vsel %vm114, %v134, %v136
  %v141 = vsel %vm114, %v132, %v134
  %v142 = vsel %vm114, %v130, %v132
  %v143 = vsel %vm114, %v128, %v130
  %v144 = vsel %vm114, %v138, %v128
  %145 = vst [vmem:[#allocation2 + $0x90] sm:$0xff] %v144
  %146 = vst [vmem:[#allocation2 + $0x98] sm:$0xff] %v143
  %147 = vst [vmem:[#allocation2 + $0xa0] sm:$0xff] %v142
  %148 = vst [vmem:[#allocation2 + $0xa8] sm:$0xff] %v141
  %149 = vst [vmem:[#allocation2 + $0xb0] sm:$0xff] %v140
  %150 = vst [vmem:[#allocation2 + $0xb8] sm:$0xff] %v139
  %151 = vrot.lane.b32.xlu0 %v39, 17
  %v152 = vpop.permute.xlu0 %151
  %153 = vrot.lane.b32.xlu0 %v40, 17
  %v154 = vpop.permute.xlu0 %153
  %155 = vrot.lane.b32.xlu0 %v41, 17
  %v156 = vpop.permute.xlu0 %155
  %157 = vrot.lane.b32.xlu0 %v42, 17
  %v158 = vpop.permute.xlu0 %157
  %159 = vrot.lane.b32.xlu0 %v43, 17
  %v160 = vpop.permute.xlu0 %159
  %161 = vrot.lane.b32.xlu0 %v44, 17
  %v162 = vpop.permute.xlu0 %161
  %vm163 = vcmp.lt.s32.totalorder %v64, 17
  %v164 = vsel %vm163, %v160, %v162
  %v165 = vsel %vm163, %v158, %v160
  %v166 = vsel %vm163, %v156, %v158
  %v167 = vsel %vm163, %v154, %v156
  %v168 = vsel %vm163, %v152, %v154
  %v169 = vsel %vm163, %v162, %v152
  %170 = vst [vmem:[#allocation2 + $0xc0] sm:$0xff] %v169
  %171 = vst [vmem:[#allocation2 + $0xc8] sm:$0xff] %v168
  %172 = vst [vmem:[#allocation2 + $0xd0] sm:$0xff] %v167
  %173 = vst [vmem:[#allocation2 + $0xd8] sm:$0xff] %v166
  %174 = vst [vmem:[#allocation2 + $0xe0] sm:$0xff] %v165
  %175 = vst [vmem:[#allocation2 + $0xe8] sm:$0xff] %v164
  %176 = vrot.lane.b32.xlu0 %v45, 17
  %v177 = vpop.permute.xlu0 %176
  %178 = vrot.lane.b32.xlu0 %v46, 17
  %v179 = vpop.permute.xlu0 %178
  %180 = vrot.lane.b32.xlu0 %v47, 17
  %v181 = vpop.permute.xlu0 %180
  %182 = vrot.lane.b32.xlu0 %v48, 17
  %v183 = vpop.permute.xlu0 %182
  %184 = vrot.lane.b32.xlu0 %v49, 17
  %v185 = vpop.permute.xlu0 %184
  %186 = vrot.lane.b32.xlu0 %v50, 17
  %v187 = vpop.permute.xlu0 %186
  %v188 = vsel %vm163, %v185, %v187
  %v189 = vsel %vm163, %v183, %v185
  %v190 = vsel %vm163, %v181, %v183
  %v191 = vsel %vm163, %v179, %v181
  %v192 = vsel %vm163, %v177, %v179
  %v193 = vsel %vm163, %v187, %v177
  %194 = vst [vmem:[#allocation2 + $0xf0] sm:$0xff] %v193
  %195 = vst [vmem:[#allocation2 + $0xf8] sm:$0xff] %v192
  %196 = vst [vmem:[#allocation2 + $0x100] sm:$0xff] %v191
  %197 = vst [vmem:[#allocation2 + $0x108] sm:$0xff] %v190
  %198 = vst [vmem:[#allocation2 + $0x110] sm:$0xff] %v189
  %199 = vst [vmem:[#allocation2 + $0x118] sm:$0xff] %v188
  %200 = vrot.lane.b32.xlu0 %v39, 1
  %v201 = vpop.permute.xlu0 %200
  %202 = vrot.lane.b32.xlu0 %v40, 1
  %v203 = vpop.permute.xlu0 %202
  %204 = vrot.lane.b32.xlu0 %v41, 1
  %v205 = vpop.permute.xlu0 %204
  %206 = vrot.lane.b32.xlu0 %v42, 1
  %v207 = vpop.permute.xlu0 %206
  %208 = vrot.lane.b32.xlu0 %v43, 1
  %v209 = vpop.permute.xlu0 %208
  %210 = vrot.lane.b32.xlu0 %v44, 1
  %v211 = vpop.permute.xlu0 %210
  %vm212 = vcmp.lt.s32.totalorder %v64, 1
  %v213 = vsel %vm212, %v209, %v211
  %v214 = vsel %vm212, %v207, %v209
  %v215 = vsel %vm212, %v205, %v207
  %v216 = vsel %vm212, %v203, %v205
  %v217 = vsel %vm212, %v201, %v203
  %v218 = vsel %vm212, %v211, %v201
  %219 = vst [vmem:[#allocation2 + $0x120] sm:$0xff] %v218
  %220 = vst [vmem:[#allocation2 + $0x128] sm:$0xff] %v217
  %221 = vst [vmem:[#allocation2 + $0x130] sm:$0xff] %v216
  %222 = vst [vmem:[#allocation2 + $0x138] sm:$0xff] %v215
  %223 = vst [vmem:[#allocation2 + $0x140] sm:$0xff] %v214
  %224 = vst [vmem:[#allocation2 + $0x148] sm:$0xff] %v213
  %225 = vrot.lane.b32.xlu0 %v45, 1
  %v226 = vpop.permute.xlu0 %225
  %227 = vrot.lane.b32.xlu0 %v46, 1
  %v228 = vpop.permute.xlu0 %227
  %229 = vrot.lane.b32.xlu0 %v47, 1
  %v230 = vpop.permute.xlu0 %229
  %231 = vrot.lane.b32.xlu0 %v48, 1
  %v232 = vpop.permute.xlu0 %231
  %233 = vrot.lane.b32.xlu0 %v49, 1
  %v234 = vpop.permute.xlu0 %233
  %235 = vrot.lane.b32.xlu0 %v50, 1
  %v236 = vpop.permute.xlu0 %235
  %v237 = vsel %vm212, %v234, %v236
  %v238 = vsel %vm212, %v232, %v234
  %v239 = vsel %vm212, %v230, %v232
  %v240 = vsel %vm212, %v228, %v230
  %v241 = vsel %vm212, %v226, %v228
  %v242 = vsel %vm212, %v236, %v226
  %243 = vst [vmem:[#allocation2 + $0x150] sm:$0xff] %v242
  %244 = vst [vmem:[#allocation2 + $0x158] sm:$0xff] %v241
  %245 = vst [vmem:[#allocation2 + $0x160] sm:$0xff] %v240
  %246 = vst [vmem:[#allocation2 + $0x168] sm:$0xff] %v239
  %247 = vst [vmem:[#allocation2 + $0x170] sm:$0xff] %v238
  %248 = vst [vmem:[#allocation2 + $0x178] sm:$0xff] %v237
  %249 = vst [vmem:[#allocation2 + $0x180] sm:$0xff] %v39
  %250 = vst [vmem:[#allocation2 + $0x188] sm:$0xff] %v40
  %251 = vst [vmem:[#allocation2 + $0x190] sm:$0xff] %v41
  %252 = vst [vmem:[#allocation2 + $0x198] sm:$0xff] %v42
  %253 = vst [vmem:[#allocation2 + $0x1a0] sm:$0xff] %v43
  %254 = vst [vmem:[#allocation2 + $0x1a8] sm:$0xff] %v44
  %255 = vst [vmem:[#allocation2 + $0x1b0] sm:$0xff] %v45
  %256 = vst [vmem:[#allocation2 + $0x1b8] sm:$0xff] %v46
  %257 = vst [vmem:[#allocation2 + $0x1c0] sm:$0xff] %v47
  %258 = vst [vmem:[#allocation2 + $0x1c8] sm:$0xff] %v48
  %259 = vst [vmem:[#allocation2 + $0x1d0] sm:$0xff] %v49
  %260 = vst [vmem:[#allocation2 + $0x1d8] sm:$0xff] %v50
  %261 = vrot.lane.b32.xlu0 %v39, 127
  %v262 = vpop.permute.xlu0 %261
  %263 = vrot.lane.b32.xlu0 %v40, 127
  %v264 = vpop.permute.xlu0 %263
  %265 = vrot.lane.b32.xlu0 %v41, 127
  %v266 = vpop.permute.xlu0 %265
  %267 = vrot.lane.b32.xlu0 %v42, 127
  %v268 = vpop.permute.xlu0 %267
  %269 = vrot.lane.b32.xlu0 %v43, 127
  %v270 = vpop.permute.xlu0 %269
  %271 = vrot.lane.b32.xlu0 %v44, 127
  %v272 = vpop.permute.xlu0 %271
  %vm273 = vcmp.lt.s32.totalorder %v64, 127
  %v274 = vsel %vm273, %v270, %v272
  %v275 = vsel %vm273, %v268, %v270
  %v276 = vsel %vm273, %v266, %v268
  %v277 = vsel %vm273, %v264, %v266
  %v278 = vsel %vm273, %v262, %v264
  %v279 = vsel %vm273, %v272, %v262
  %280 = vst [vmem:[#allocation2 + $0x1e0] sm:$0xff] %v278
  %281 = vst [vmem:[#allocation2 + $0x1e8] sm:$0xff] %v277
  %282 = vst [vmem:[#allocation2 + $0x1f0] sm:$0xff] %v276
  %283 = vst [vmem:[#allocation2 + $0x1f8] sm:$0xff] %v275
  %284 = vst [vmem:[#allocation2 + $0x200] sm:$0xff] %v274
  %285 = vst [vmem:[#allocation2 + $0x208] sm:$0xff] %v279
  %286 = vrot.lane.b32.xlu0 %v45, 127
  %v287 = vpop.permute.xlu0 %286
  %288 = vrot.lane.b32.xlu0 %v46, 127
  %v289 = vpop.permute.xlu0 %288
  %290 = vrot.lane.b32.xlu0 %v47, 127
  %v291 = vpop.permute.xlu0 %290
  %292 = vrot.lane.b32.xlu0 %v48, 127
  %v293 = vpop.permute.xlu0 %292
  %294 = vrot.lane.b32.xlu0 %v49, 127
  %v295 = vpop.permute.xlu0 %294
  %296 = vrot.lane.b32.xlu0 %v50, 127
  %v297 = vpop.permute.xlu0 %296
  %v298 = vsel %vm273, %v295, %v297
  %v299 = vsel %vm273, %v293, %v295
  %v300 = vsel %vm273, %v291, %v293
  %v301 = vsel %vm273, %v289, %v291
  %v302 = vsel %vm273, %v287, %v289
  %v303 = vsel %vm273, %v297, %v287
  %304 = vst [vmem:[#allocation2 + $0x210] sm:$0xff] %v302
  %305 = vst [vmem:[#allocation2 + $0x218] sm:$0xff] %v301
  %306 = vst [vmem:[#allocation2 + $0x220] sm:$0xff] %v300
  %307 = vst [vmem:[#allocation2 + $0x228] sm:$0xff] %v299
  %308 = vst [vmem:[#allocation2 + $0x230] sm:$0xff] %v298
  %309 = vst [vmem:[#allocation2 + $0x238] sm:$0xff] %v303
  %310 = vrot.lane.b32.xlu0 %v39, 111
  %v311 = vpop.permute.xlu0 %310
  %312 = vrot.lane.b32.xlu0 %v40, 111
  %v313 = vpop.permute.xlu0 %312
  %314 = vrot.lane.b32.xlu0 %v41, 111
  %v315 = vpop.permute.xlu0 %314
  %316 = vrot.lane.b32.xlu0 %v42, 111
  %v317 = vpop.permute.xlu0 %316
  %318 = vrot.lane.b32.xlu0 %v43, 111
  %v319 = vpop.permute.xlu0 %318
  %320 = vrot.lane.b32.xlu0 %v44, 111
  %v321 = vpop.permute.xlu0 %320
  %vm322 = vcmp.lt.s32.totalorder %v64, 111
  %v323 = vsel %vm322, %v319, %v321
  %v324 = vsel %vm322, %v317, %v319
  %v325 = vsel %vm322, %v315, %v317
  %v326 = vsel %vm322, %v313, %v315
  %v327 = vsel %vm322, %v311, %v313
  %v328 = vsel %vm322, %v321, %v311
  %329 = vst [vmem:[#allocation2 + $0x240] sm:$0xff] %v327
  %330 = vst [vmem:[#allocation2 + $0x248] sm:$0xff] %v326
  %331 = vst [vmem:[#allocation2 + $0x250] sm:$0xff] %v325
  %332 = vst [vmem:[#allocation2 + $0x258] sm:$0xff] %v324
  %333 = vst [vmem:[#allocation2 + $0x260] sm:$0xff] %v323
  %334 = vst [vmem:[#allocation2 + $0x268] sm:$0xff] %v328
  %335 = vrot.lane.b32.xlu0 %v45, 111
  %v336 = vpop.permute.xlu0 %335
  %337 = vrot.lane.b32.xlu0 %v46, 111
  %v338 = vpop.permute.xlu0 %337
  %339 = vrot.lane.b32.xlu0 %v47, 111
  %v340 = vpop.permute.xlu0 %339
  %341 = vrot.lane.b32.xlu0 %v48, 111
  %v342 = vpop.permute.xlu0 %341
  %343 = vrot.lane.b32.xlu0 %v49, 111
  %v344 = vpop.permute.xlu0 %343
  %345 = vrot.lane.b32.xlu0 %v50, 111
  %v346 = vpop.permute.xlu0 %345
  %v347 = vsel %vm322, %v344, %v346
  %v348 = vsel %vm322, %v342, %v344
  %v349 = vsel %vm322, %v340, %v342
  %v350 = vsel %vm322, %v338, %v340
  %v351 = vsel %vm322, %v336, %v338
  %v352 = vsel %vm322, %v346, %v336
  %353 = vst [vmem:[#allocation2 + $0x270] sm:$0xff] %v351
  %354 = vst [vmem:[#allocation2 + $0x278] sm:$0xff] %v350
  %355 = vst [vmem:[#allocation2 + $0x280] sm:$0xff] %v349
  %356 = vst [vmem:[#allocation2 + $0x288] sm:$0xff] %v348
  %357 = vst [vmem:[#allocation2 + $0x290] sm:$0xff] %v347
  %358 = vst [vmem:[#allocation2 + $0x298] sm:$0xff] %v352
  %359 = vrot.lane.b32.xlu0 %v39, 110
  %v360 = vpop.permute.xlu0 %359
  %361 = vrot.lane.b32.xlu0 %v40, 110
  %v362 = vpop.permute.xlu0 %361
  %363 = vrot.lane.b32.xlu0 %v41, 110
  %v364 = vpop.permute.xlu0 %363
  %365 = vrot.lane.b32.xlu0 %v42, 110
  %v366 = vpop.permute.xlu0 %365
  %367 = vrot.lane.b32.xlu0 %v43, 110
  %v368 = vpop.permute.xlu0 %367
  %369 = vrot.lane.b32.xlu0 %v44, 110
  %v370 = vpop.permute.xlu0 %369
  %vm371 = vcmp.lt.s32.totalorder %v64, 110
  %v372 = vsel %vm371, %v368, %v370
  %v373 = vsel %vm371, %v366, %v368
  %v374 = vsel %vm371, %v364, %v366
  %v375 = vsel %vm371, %v362, %v364
  %v376 = vsel %vm371, %v360, %v362
  %v377 = vsel %vm371, %v370, %v360
  %378 = vst [vmem:[#allocation2 + $0x2a0] sm:$0xff] %v376
  %379 = vst [vmem:[#allocation2 + $0x2a8] sm:$0xff] %v375
  %380 = vst [vmem:[#allocation2 + $0x2b0] sm:$0xff] %v374
  %381 = vst [vmem:[#allocation2 + $0x2b8] sm:$0xff] %v373
  %382 = vst [vmem:[#allocation2 + $0x2c0] sm:$0xff] %v372
  %383 = vst [vmem:[#allocation2 + $0x2c8] sm:$0xff] %v377
  %384 = vrot.lane.b32.xlu0 %v45, 110
  %v385 = vpop.permute.xlu0 %384
  %386 = vrot.lane.b32.xlu0 %v46, 110
  %v387 = vpop.permute.xlu0 %386
  %388 = vrot.lane.b32.xlu0 %v47, 110
  %v389 = vpop.permute.xlu0 %388
  %390 = vrot.lane.b32.xlu0 %v48, 110
  %v391 = vpop.permute.xlu0 %390
  %392 = vrot.lane.b32.xlu0 %v49, 110
  %v393 = vpop.permute.xlu0 %392
  %394 = vrot.lane.b32.xlu0 %v50, 110
  %v395 = vpop.permute.xlu0 %394
  %v396 = vsel %vm371, %v393, %v395
  %v397 = vsel %vm371, %v391, %v393
  %v398 = vsel %vm371, %v389, %v391
  %v399 = vsel %vm371, %v387, %v389
  %v400 = vsel %vm371, %v385, %v387
  %v401 = vsel %vm371, %v395, %v385
  %402 = vst [vmem:[#allocation2 + $0x2d0] sm:$0xff] %v400
  %403 = vst [vmem:[#allocation2 + $0x2d8] sm:$0xff] %v399
  %404 = vst [vmem:[#allocation2 + $0x2e0] sm:$0xff] %v398
  %405 = vst [vmem:[#allocation2 + $0x2e8] sm:$0xff] %v397
  %406 = vst [vmem:[#allocation2 + $0x2f0] sm:$0xff] %v396
  %407 = vst [vmem:[#allocation2 + $0x2f8] sm:$0xff] %v401
  %408 = vrot.lane.b32.xlu0 %v39, 109
  %v409 = vpop.permute.xlu0 %408
  %410 = vrot.lane.b32.xlu0 %v40, 109
  %v411 = vpop.permute.xlu0 %410
  %412 = vrot.lane.b32.xlu0 %v41, 109
  %v413 = vpop.permute.xlu0 %412
  %414 = vrot.lane.b32.xlu0 %v42, 109
  %v415 = vpop.permute.xlu0 %414
  %416 = vrot.lane.b32.xlu0 %v43, 109
  %v417 = vpop.permute.xlu0 %416
  %418 = vrot.lane.b32.xlu0 %v44, 109
  %v419 = vpop.permute.xlu0 %418
  %vm420 = vcmp.lt.s32.totalorder %v64, 109
  %v421 = vsel %vm420, %v417, %v419
  %v422 = vsel %vm420, %v415, %v417
  %v423 = vsel %vm420, %v413, %v415
  %v424 = vsel %vm420, %v411, %v413
  %v425 = vsel %vm420, %v409, %v411
  %v426 = vsel %vm420, %v419, %v409
  %427 = vst [vmem:[#allocation2 + $0x300] sm:$0xff] %v425
  %428 = vst [vmem:[#allocation2 + $0x308] sm:$0xff] %v424
  %429 = vst [vmem:[#allocation2 + $0x310] sm:$0xff] %v423
  %430 = vst [vmem:[#allocation2 + $0x318] sm:$0xff] %v422
  %431 = vst [vmem:[#allocation2 + $0x320] sm:$0xff] %v421
  %432 = vst [vmem:[#allocation2 + $0x328] sm:$0xff] %v426
  %433 = vrot.lane.b32.xlu0 %v45, 109
  %v434 = vpop.permute.xlu0 %433
  %435 = vrot.lane.b32.xlu0 %v46, 109
  %v436 = vpop.permute.xlu0 %435
  %437 = vrot.lane.b32.xlu0 %v47, 109
  %v438 = vpop.permute.xlu0 %437
  %439 = vrot.lane.b32.xlu0 %v48, 109
  %v440 = vpop.permute.xlu0 %439
  %441 = vrot.lane.b32.xlu0 %v49, 109
  %v442 = vpop.permute.xlu0 %441
  %443 = vrot.lane.b32.xlu0 %v50, 109
  %v444 = vpop.permute.xlu0 %443
  %v445 = vsel %vm420, %v442, %v444
  %v446 = vsel %vm420, %v440, %v442
  %v447 = vsel %vm420, %v438, %v440
  %v448 = vsel %vm420, %v436, %v438
  %v449 = vsel %vm420, %v434, %v436
  %v450 = vsel %vm420, %v444, %v434
  %451 = vst [vmem:[#allocation2 + $0x330] sm:$0xff] %v449
  %452 = vst [vmem:[#allocation2 + $0x338] sm:$0xff] %v448
  %453 = vst [vmem:[#allocation2 + $0x340] sm:$0xff] %v447
  %454 = vst [vmem:[#allocation2 + $0x348] sm:$0xff] %v446
  %455 = vst [vmem:[#allocation2 + $0x350] sm:$0xff] %v445
  %456 = vst [vmem:[#allocation2 + $0x358] sm:$0xff] %v450
  %v457 = vld [vmem:[%s3] sm:$0xff]
  %v458 = vld [vmem:[%s3 + $0x8] sm:$0xff]
  %v459 = vld [vmem:[#allocation2] sm:$0xff]
  %v460 = vld [vmem:[#allocation2 + $0x8] sm:$0xff]
  %v461 = vld [vmem:[#allocation2 + $0x10] sm:$0xff]
  %v462 = vld [vmem:[#allocation2 + $0x18] sm:$0xff]
  %v463 = vld [vmem:[#allocation2 + $0x20] sm:$0xff]
  %v464 = vld [vmem:[#allocation2 + $0x28] sm:$0xff]
  %v465 = vld [vmem:[#allocation2 + $0x30] sm:$0xff]
  %v466 = vld [vmem:[#allocation2 + $0x38] sm:$0xff]
  %v467 = vld [vmem:[#allocation2 + $0x40] sm:$0xff]
  %v468 = vld [vmem:[#allocation2 + $0x48] sm:$0xff]
  %v469 = vld [vmem:[#allocation2 + $0x50] sm:$0xff]
  %v470 = vld [vmem:[#allocation2 + $0x58] sm:$0xff]
  %v471 = vld [vmem:[#allocation2 + $0x60] sm:$0xff]
  %v472 = vld [vmem:[#allocation2 + $0x68] sm:$0xff]
  %v473 = vld [vmem:[#allocation2 + $0x70] sm:$0xff]
  %v474 = vld [vmem:[#allocation2 + $0x78] sm:$0xff]
  %v475 = vld [vmem:[#allocation2 + $0x80] sm:$0xff]
  %v476 = vld [vmem:[#allocation2 + $0x88] sm:$0xff]
  %v477 = vld [vmem:[#allocation2 + $0x90] sm:$0xff]
  %v478 = vld [vmem:[#allocation2 + $0x98] sm:$0xff]
  %v479 = vld [vmem:[#allocation2 + $0xa0] sm:$0xff]
  %v480 = vld [vmem:[#allocation2 + $0xa8] sm:$0xff]
  %v481 = vld [vmem:[#allocation2 + $0xb0] sm:$0xff]
  %v482 = vld [vmem:[#allocation2 + $0xb8] sm:$0xff]
  %v483 = vld [vmem:[#allocation2 + $0xc0] sm:$0xff]
  %v484 = vld [vmem:[#allocation2 + $0xc8] sm:$0xff]
  %v485 = vld [vmem:[#allocation2 + $0xd0] sm:$0xff]
  %v486 = vld [vmem:[#allocation2 + $0xd8] sm:$0xff]
  %v487 = vld [vmem:[#allocation2 + $0xe0] sm:$0xff]
  %v488 = vld [vmem:[#allocation2 + $0xe8] sm:$0xff]
  %v489 = vld [vmem:[#allocation2 + $0xf0] sm:$0xff]
  %v490 = vld [vmem:[#allocation2 + $0xf8] sm:$0xff]
  %v491 = vld [vmem:[#allocation2 + $0x100] sm:$0xff]
  %v492 = vld [vmem:[#allocation2 + $0x108] sm:$0xff]
  %v493 = vld [vmem:[#allocation2 + $0x110] sm:$0xff]
  %v494 = vld [vmem:[#allocation2 + $0x118] sm:$0xff]
  %v495 = vld [vmem:[#allocation2 + $0x120] sm:$0xff]
  %v496 = vld [vmem:[#allocation2 + $0x128] sm:$0xff]
  %v497 = vld [vmem:[#allocation2 + $0x130] sm:$0xff]
  %v498 = vld [vmem:[#allocation2 + $0x138] sm:$0xff]
  %v499 = vld [vmem:[#allocation2 + $0x140] sm:$0xff]
  %v500 = vld [vmem:[#allocation2 + $0x148] sm:$0xff]
  %v501 = vld [vmem:[#allocation2 + $0x150] sm:$0xff]
  %v502 = vld [vmem:[#allocation2 + $0x158] sm:$0xff]
  %v503 = vld [vmem:[#allocation2 + $0x160] sm:$0xff]
  %v504 = vld [vmem:[#allocation2 + $0x168] sm:$0xff]
  %v505 = vld [vmem:[#allocation2 + $0x170] sm:$0xff]
  %v506 = vld [vmem:[#allocation2 + $0x178] sm:$0xff]
  %v507 = vld [vmem:[#allocation2 + $0x180] sm:$0xff]
  %v508 = vld [vmem:[#allocation2 + $0x188] sm:$0xff]
  %v509 = vld [vmem:[#allocation2 + $0x190] sm:$0xff]
  %v510 = vld [vmem:[#allocation2 + $0x198] sm:$0xff]
  %v511 = vld [vmem:[#allocation2 + $0x1a0] sm:$0xff]
  %v512 = vld [vmem:[#allocation2 + $0x1a8] sm:$0xff]
  %v513 = vld [vmem:[#allocation2 + $0x1b0] sm:$0xff]
  %v514 = vld [vmem:[#allocation2 + $0x1b8] sm:$0xff]
  %v515 = vld [vmem:[#allocation2 + $0x1c0] sm:$0xff]
  %v516 = vld [vmem:[#allocation2 + $0x1c8] sm:$0xff]
  %v517 = vld [vmem:[#allocation2 + $0x1d0] sm:$0xff]
  %v518 = vld [vmem:[#allocation2 + $0x1d8] sm:$0xff]
  %v519 = vld [vmem:[#allocation2 + $0x1e0] sm:$0xff]
  %v520 = vld [vmem:[#allocation2 + $0x1e8] sm:$0xff]
  %v521 = vld [vmem:[#allocation2 + $0x1f0] sm:$0xff]
  %v522 = vld [vmem:[#allocation2 + $0x1f8] sm:$0xff]
  %v523 = vld [vmem:[#allocation2 + $0x200] sm:$0xff]
  %v524 = vld [vmem:[#allocation2 + $0x208] sm:$0xff]
  %v525 = vld [vmem:[#allocation2 + $0x210] sm:$0xff]
  %v526 = vld [vmem:[#allocation2 + $0x218] sm:$0xff]
  %v527 = vld [vmem:[#allocation2 + $0x220] sm:$0xff]
  %v528 = vld [vmem:[#allocation2 + $0x228] sm:$0xff]
  %v529 = vld [vmem:[#allocation2 + $0x230] sm:$0xff]
  %v530 = vld [vmem:[#allocation2 + $0x238] sm:$0xff]
  %v531 = vld [vmem:[#allocation2 + $0x240] sm:$0xff]
  %v532 = vld [vmem:[#allocation2 + $0x248] sm:$0xff]
  %v533 = vld [vmem:[#allocation2 + $0x250] sm:$0xff]
  %v534 = vld [vmem:[#allocation2 + $0x258] sm:$0xff]
  %v535 = vld [vmem:[#allocation2 + $0x260] sm:$0xff]
  %v536 = vld [vmem:[#allocation2 + $0x268] sm:$0xff]
  %v537 = vld [vmem:[#allocation2 + $0x270] sm:$0xff]
  %v538 = vld [vmem:[#allocation2 + $0x278] sm:$0xff]
  %v539 = vld [vmem:[#allocation2 + $0x280] sm:$0xff]
  %v540 = vld [vmem:[#allocation2 + $0x288] sm:$0xff]
  %v541 = vld [vmem:[#allocation2 + $0x290] sm:$0xff]
  %v542 = vld [vmem:[#allocation2 + $0x298] sm:$0xff]
  %v543 = vld [vmem:[#allocation2 + $0x2a0] sm:$0xff]
  %v544 = vld [vmem:[#allocation2 + $0x2a8] sm:$0xff]
  %v545 = vld [vmem:[#allocation2 + $0x2b0] sm:$0xff]
  %v546 = vld [vmem:[#allocation2 + $0x2b8] sm:$0xff]
  %v547 = vld [vmem:[#allocation2 + $0x2c0] sm:$0xff]
  %v548 = vld [vmem:[#allocation2 + $0x2c8] sm:$0xff]
  %v549 = vld [vmem:[#allocation2 + $0x2d0] sm:$0xff]
  %v550 = vld [vmem:[#allocation2 + $0x2d8] sm:$0xff]
  %v551 = vld [vmem:[#allocation2 + $0x2e0] sm:$0xff]
  %v552 = vld [vmem:[#allocation2 + $0x2e8] sm:$0xff]
  %v553 = vld [vmem:[#allocation2 + $0x2f0] sm:$0xff]
  %v554 = vld [vmem:[#allocation2 + $0x2f8] sm:$0xff]
  %v555 = vld [vmem:[#allocation2 + $0x300] sm:$0xff]
  %v556 = vld [vmem:[#allocation2 + $0x308] sm:$0xff]
  %v557 = vld [vmem:[#allocation2 + $0x310] sm:$0xff]
  %v558 = vld [vmem:[#allocation2 + $0x318] sm:$0xff]
  %v559 = vld [vmem:[#allocation2 + $0x320] sm:$0xff]
  %v560 = vld [vmem:[#allocation2 + $0x328] sm:$0xff]
  %v561 = vld [vmem:[#allocation2 + $0x330] sm:$0xff]
  %v562 = vld [vmem:[#allocation2 + $0x338] sm:$0xff]
  %v563 = vld [vmem:[#allocation2 + $0x340] sm:$0xff]
  %v564 = vld [vmem:[#allocation2 + $0x348] sm:$0xff]
  %v565 = vld [vmem:[#allocation2 + $0x350] sm:$0xff]
  %v566 = vld [vmem:[#allocation2 + $0x358] sm:$0xff]
  %v567 = vld [vmem:[%s4] sm:$0xff]
  %569 = vset.pattern.permute.xlu0 0
  %570 = vperm.xlu0 %569, %v567
  %v571 = vpop.permute.xlu0 %570
  %vm573 = vcmask 130048
  %v575 = vsel %vm573, %v458, 0
  %577 = vmatpush.msra.mxu0 %v549
  %578 = vmatpush.msra.mxu0 %v543
  %579 = vmatpush.msra.mxu0 %v537
  %580 = vmatpush.msra.mxu0 %v531
  %581 = vmatpush.msra.mxu0 %v525
  %582 = vmatpush.msra.mxu0 %v519
  %583 = vmatpush.msra.mxu0 %v513
  %584 = vmatpush.msra.mxu0 %v507
  %585 = vmatpush.msra.mxu0 %v501
  %586 = vmatpush.msra.mxu0 %v495
  %587 = vmatpush.msra.mxu0 %v489
  %588 = vmatpush.msra.mxu0 %v483
  %589 = vmatpush.msra.mxu0 %v477
  %590 = vmatpush.msra.mxu0 %v471
  %591 = vmatpush.msra.mxu0 %v465
  %592 = vmatpush.msra.mxu0 %v459
  %593 = vmatmul.f32.gmra.mxu0 %v457
  %v594 = vpop.f32.mrf.mxu0
  %v595 = vadd.f32 %v571, %v594
  %596 = vdwg.mxu0
  %597 = vmatpush.msra.mxu0 0.0
  %598 = vmatpush.msra.mxu0 0.0
  %599 = vmatpush.msra.mxu0 0.0
  %600 = vmatpush.msra.mxu0 0.0
  %601 = vmatpush.msra.mxu0 0.0
  %602 = vmatpush.msra.mxu0 0.0
  %603 = vmatpush.msra.mxu0 0.0
  %604 = vmatpush.msra.mxu0 0.0
  %605 = vmatpush.msra.mxu0 0.0
  %606 = vmatpush.msra.mxu0 0.0
  %607 = vmatpush.msra.mxu0 0.0
  %608 = vmatpush.msra.mxu0 0.0
  %609 = vmatpush.msra.mxu0 0.0
  %610 = vmatpush.msra.mxu0 0.0
  %611 = vmatpush.msra.mxu0 %v561
  %612 = vmatpush.msra.mxu0 %v555
  %613 = vmatmul.f32.gmra.mxu0 %v575
  %v614 = vpop.f32.mrf.mxu0
  %v615 = vadd.f32 %v595, %v614
  %616 = vdwg.mxu0
  %617 = vmatpush.msra.mxu0 %v550
  %618 = vmatpush.msra.mxu0 %v544
  %619 = vmatpush.msra.mxu0 %v538
  %620 = vmatpush.msra.mxu0 %v532
  %621 = vmatpush.msra.mxu0 %v526
  %622 = vmatpush.msra.mxu0 %v520
  %623 = vmatpush.msra.mxu0 %v514
  %624 = vmatpush.msra.mxu0 %v508
  %625 = vmatpush.msra.mxu0 %v502
  %626 = vmatpush.msra.mxu0 %v496
  %627 = vmatpush.msra.mxu0 %v490
  %628 = vmatpush.msra.mxu0 %v484
  %629 = vmatpush.msra.mxu0 %v478
  %630 = vmatpush.msra.mxu0 %v472
  %631 = vmatpush.msra.mxu0 %v466
  %632 = vmatpush.msra.mxu0 %v460
  %633 = vmatmul.f32.gmra.mxu0 %v457
  %v634 = vpop.f32.mrf.mxu0
  %v635 = vadd.f32 %v571, %v634
  %636 = vdwg.mxu0
  %637 = vmatpush.msra.mxu0 0.0
  %638 = vmatpush.msra.mxu0 0.0
  %639 = vmatpush.msra.mxu0 0.0
  %640 = vmatpush.msra.mxu0 0.0
  %641 = vmatpush.msra.mxu0 0.0
  %642 = vmatpush.msra.mxu0 0.0
  %643 = vmatpush.msra.mxu0 0.0
  %644 = vmatpush.msra.mxu0 0.0
  %645 = vmatpush.msra.mxu0 0.0
  %646 = vmatpush.msra.mxu0 0.0
  %647 = vmatpush.msra.mxu0 0.0
  %648 = vmatpush.msra.mxu0 0.0
  %649 = vmatpush.msra.mxu0 0.0
  %650 = vmatpush.msra.mxu0 0.0
  %651 = vmatpush.msra.mxu0 %v562
  %652 = vmatpush.msra.mxu0 %v556
  %653 = vmatmul.f32.gmra.mxu0 %v575
  %v654 = vpop.f32.mrf.mxu0
  %v655 = vadd.f32 %v635, %v654
  %656 = vdwg.mxu0
  %657 = vmatpush.msra.mxu0 %v551
  %658 = vmatpush.msra.mxu0 %v545
  %659 = vmatpush.msra.mxu0 %v539
  %660 = vmatpush.msra.mxu0 %v533
  %661 = vmatpush.msra.mxu0 %v527
  %662 = vmatpush.msra.mxu0 %v521
  %663 = vmatpush.msra.mxu0 %v515
  %664 = vmatpush.msra.mxu0 %v509
  %665 = vmatpush.msra.mxu0 %v503
  %666 = vmatpush.msra.mxu0 %v497
  %667 = vmatpush.msra.mxu0 %v491
  %668 = vmatpush.msra.mxu0 %v485
  %669 = vmatpush.msra.mxu0 %v479
  %670 = vmatpush.msra.mxu0 %v473
  %671 = vmatpush.msra.mxu0 %v467
  %672 = vmatpush.msra.mxu0 %v461
  %673 = vmatmul.f32.gmra.mxu0 %v457
  %v674 = vpop.f32.mrf.mxu0
  %v675 = vadd.f32 %v571, %v674
  %676 = vdwg.mxu0
  %677 = vmatpush.msra.mxu0 0.0
  %678 = vmatpush.msra.mxu0 0.0
  %679 = vmatpush.msra.mxu0 0.0
  %680 = vmatpush.msra.mxu0 0.0
  %681 = vmatpush.msra.mxu0 0.0
  %682 = vmatpush.msra.mxu0 0.0
  %683 = vmatpush.msra.mxu0 0.0
  %684 = vmatpush.msra.mxu0 0.0
  %685 = vmatpush.msra.mxu0 0.0
  %686 = vmatpush.msra.mxu0 0.0
  %687 = vmatpush.msra.mxu0 0.0
  %688 = vmatpush.msra.mxu0 0.0
  %689 = vmatpush.msra.mxu0 0.0
  %690 = vmatpush.msra.mxu0 0.0
  %691 = vmatpush.msra.mxu0 %v563
  %692 = vmatpush.msra.mxu0 %v557
  %693 = vmatmul.f32.gmra.mxu0 %v575
  %v694 = vpop.f32.mrf.mxu0
  %v695 = vadd.f32 %v675, %v694
  %696 = vdwg.mxu0
  %697 = vmatpush.msra.mxu0 %v552
  %698 = vmatpush.msra.mxu0 %v546
  %699 = vmatpush.msra.mxu0 %v540
  %700 = vmatpush.msra.mxu0 %v534
  %701 = vmatpush.msra.mxu0 %v528
  %702 = vmatpush.msra.mxu0 %v522
  %703 = vmatpush.msra.mxu0 %v516
  %704 = vmatpush.msra.mxu0 %v510
  %705 = vmatpush.msra.mxu0 %v504
  %706 = vmatpush.msra.mxu0 %v498
  %707 = vmatpush.msra.mxu0 %v492
  %708 = vmatpush.msra.mxu0 %v486
  %709 = vmatpush.msra.mxu0 %v480
  %710 = vmatpush.msra.mxu0 %v474
  %711 = vmatpush.msra.mxu0 %v468
  %712 = vmatpush.msra.mxu0 %v462
  %713 = vmatmul.f32.gmra.mxu0 %v457
  %v714 = vpop.f32.mrf.mxu0
  %v715 = vadd.f32 %v571, %v714
  %716 = vdwg.mxu0
  %717 = vmatpush.msra.mxu0 0.0
  %718 = vmatpush.msra.mxu0 0.0
  %719 = vmatpush.msra.mxu0 0.0
  %720 = vmatpush.msra.mxu0 0.0
  %721 = vmatpush.msra.mxu0 0.0
  %722 = vmatpush.msra.mxu0 0.0
  %723 = vmatpush.msra.mxu0 0.0
  %724 = vmatpush.msra.mxu0 0.0
  %725 = vmatpush.msra.mxu0 0.0
  %726 = vmatpush.msra.mxu0 0.0
  %727 = vmatpush.msra.mxu0 0.0
  %728 = vmatpush.msra.mxu0 0.0
  %729 = vmatpush.msra.mxu0 0.0
  %730 = vmatpush.msra.mxu0 0.0
  %731 = vmatpush.msra.mxu0 %v564
  %732 = vmatpush.msra.mxu0 %v558
  %733 = vmatmul.f32.gmra.mxu0 %v575
  %v734 = vpop.f32.mrf.mxu0
  %v735 = vadd.f32 %v715, %v734
  %736 = vdwg.mxu0
  %737 = vmatpush.msra.mxu0 %v553
  %738 = vmatpush.msra.mxu0 %v547
  %739 = vmatpush.msra.mxu0 %v541
  %740 = vmatpush.msra.mxu0 %v535
  %741 = vmatpush.msra.mxu0 %v529
  %742 = vmatpush.msra.mxu0 %v523
  %743 = vmatpush.msra.mxu0 %v517
  %744 = vmatpush.msra.mxu0 %v511
  %745 = vmatpush.msra.mxu0 %v505
  %746 = vmatpush.msra.mxu0 %v499
  %747 = vmatpush.msra.mxu0 %v493
  %748 = vmatpush.msra.mxu0 %v487
  %749 = vmatpush.msra.mxu0 %v481
  %750 = vmatpush.msra.mxu0 %v475
  %751 = vmatpush.msra.mxu0 %v469
  %752 = vmatpush.msra.mxu0 %v463
  %753 = vmatmul.f32.gmra.mxu0 %v457
  %v754 = vpop.f32.mrf.mxu0
  %v755 = vadd.f32 %v571, %v754
  %756 = vdwg.mxu0
  %757 = vmatpush.msra.mxu0 0.0
  %758 = vmatpush.msra.mxu0 0.0
  %759 = vmatpush.msra.mxu0 0.0
  %760 = vmatpush.msra.mxu0 0.0
  %761 = vmatpush.msra.mxu0 0.0
  %762 = vmatpush.msra.mxu0 0.0
  %763 = vmatpush.msra.mxu0 0.0
  %764 = vmatpush.msra.mxu0 0.0
  %765 = vmatpush.msra.mxu0 0.0
  %766 = vmatpush.msra.mxu0 0.0
  %767 = vmatpush.msra.mxu0 0.0
  %768 = vmatpush.msra.mxu0 0.0
  %769 = vmatpush.msra.mxu0 0.0
  %770 = vmatpush.msra.mxu0 0.0
  %771 = vmatpush.msra.mxu0 %v565
  %772 = vmatpush.msra.mxu0 %v559
  %773 = vmatmul.f32.gmra.mxu0 %v575
  %v774 = vpop.f32.mrf.mxu0
  %v775 = vadd.f32 %v755, %v774
  %776 = vdwg.mxu0
  %777 = vmatpush.msra.mxu0 %v554
  %778 = vmatpush.msra.mxu0 %v548
  %779 = vmatpush.msra.mxu0 %v542
  %780 = vmatpush.msra.mxu0 %v536
  %781 = vmatpush.msra.mxu0 %v530
  %782 = vmatpush.msra.mxu0 %v524
  %783 = vmatpush.msra.mxu0 %v518
  %784 = vmatpush.msra.mxu0 %v512
  %785 = vmatpush.msra.mxu0 %v506
  %786 = vmatpush.msra.mxu0 %v500
  %787 = vmatpush.msra.mxu0 %v494
  %788 = vmatpush.msra.mxu0 %v488
  %789 = vmatpush.msra.mxu0 %v482
  %790 = vmatpush.msra.mxu0 %v476
  %791 = vmatpush.msra.mxu0 %v470
  %792 = vmatpush.msra.mxu0 %v464
  %793 = vmatmul.f32.gmra.mxu0 %v457
  %v794 = vpop.f32.mrf.mxu0
  %v795 = vadd.f32 %v571, %v794
  %796 = vdwg.mxu0
  %797 = vmatpush.msra.mxu0 0.0
  %798 = vmatpush.msra.mxu0 0.0
  %799 = vmatpush.msra.mxu0 0.0
  %800 = vmatpush.msra.mxu0 0.0
  %801 = vmatpush.msra.mxu0 0.0
  %802 = vmatpush.msra.mxu0 0.0
  %803 = vmatpush.msra.mxu0 0.0
  %804 = vmatpush.msra.mxu0 0.0
  %805 = vmatpush.msra.mxu0 0.0
  %806 = vmatpush.msra.mxu0 0.0
  %807 = vmatpush.msra.mxu0 0.0
  %808 = vmatpush.msra.mxu0 0.0
  %809 = vmatpush.msra.mxu0 0.0
  %810 = vmatpush.msra.mxu0 0.0
  %811 = vmatpush.msra.mxu0 %v566
  %812 = vmatpush.msra.mxu0 %v560
  %813 = vmatmul.f32.gmra.mxu0 %v575
  %v814 = vpop.f32.mrf.mxu0
  %v815 = vadd.f32 %v795, %v814
  %816 = vdwg.mxu0
  %v818 = vperm.slane %v38, 0
  %v819 = vperm.slane %v38, 1
  %v820 = vperm.slane %v38, 2
  %v821 = vperm.slane %v38, 3
  %v822 = vperm.slane %v38, 4
  %v823 = vperm.slane %v38, 5
  %v830 = vmul.f32 %v615, %v818
  %v831 = vmul.f32 %v655, %v819
  %v832 = vmul.f32 %v695, %v820
  %v833 = vmul.f32 %v735, %v821
  %v834 = vmul.f32 %v775, %v822
  %v835 = vmul.f32 %v815, %v823
  %v836 = vadd.f32 %v830, %v831
  %v837 = vadd.f32 %v836, %v832
  %v838 = vadd.f32 %v837, %v833
  %v839 = vadd.f32 %v838, %v834
  %v840 = vadd.f32 %v839, %v835
  %841 = vadd.xlane.f32.xlu0 %v840
  %v842 = vpop.xlane.xlu0 %841
  %v843 = vmul.f32 %v842, 0.001953125
  %v844 = vsub.f32 %v615, %v843
  %v845 = vsub.f32 %v655, %v843
  %v846 = vsub.f32 %v695, %v843
  %v847 = vsub.f32 %v735, %v843
  %v848 = vsub.f32 %v775, %v843
  %v849 = vsub.f32 %v815, %v843
  %v850 = vmul.f32 %v844, %v818
  %v851 = vmul.f32 %v845, %v819
  %v852 = vmul.f32 %v846, %v820
  %v853 = vmul.f32 %v847, %v821
  %v854 = vmul.f32 %v848, %v822
  %v855 = vmul.f32 %v849, %v823
  %v856 = vmul.f32 %v850, %v850
  %v857 = vmul.f32 %v851, %v851
  %v858 = vmul.f32 %v852, %v852
  %v859 = vmul.f32 %v853, %v853
  %v860 = vmul.f32 %v854, %v854
  %v861 = vmul.f32 %v855, %v855
  %v862 = vadd.f32 %v856, %v857
  %v863 = vadd.f32 %v862, %v858
  %v864 = vadd.f32 %v863, %v859
  %v865 = vadd.f32 %v864, %v860
  %v866 = vadd.f32 %v865, %v861
  %867 = vadd.xlane.f32.xlu0 %v866
  %v868 = vpop.xlane.xlu0 %867
  %v869 = vmul.f32 %v868, 0.001953125
  %v870 = vld [vmem:[%s5] sm:$0xff]
  %v871 = vadd.f32 %v869, 1e-05
  %v872 = vrsqrt.pop %v871
  %v873 = vmul.f32 %v872, %v871
  %v874 = vmul.f32 %v873, %v872
  %v875 = vmul.f32 0.5, %v874
  %v876 = vsub.f32 1.5, %v875
  %v877 = vmul.f32 %v872, %v876
  %vm878 = vweird.f32 %v871
  %vm879 = vweird.f32 %v872
  %vm880 = vmor %vm878, %vm879
  %v881 = vsel %vm880, %v872, %v877
  %v882 = vmul.f32 %v870, %v881
  %v883 = vld [vmem:[%s6] sm:$0xff]
  %v884 = vmul.f32 %v843, %v882
  %v885 = vsub.f32 %v883, %v884
  %887 = vset.pattern.permute.xlu0 0
  %888 = vperm.xlu0 %887, %v882
  %v889 = vpop.permute.xlu0 %888
  %v891 = vmul.f32 %v615, %v889
  %v892 = vmul.f32 %v655, %v889
  %v893 = vmul.f32 %v695, %v889
  %v894 = vmul.f32 %v735, %v889
  %v895 = vmul.f32 %v775, %v889
  %v896 = vmul.f32 %v815, %v889
  %898 = vset.pattern.permute.xlu0 0
  %899 = vperm.xlu0 %898, %v885
  %v900 = vpop.permute.xlu0 %899
  %v902 = vadd.f32 %v891, %v900
  %v903 = vadd.f32 %v892, %v900
  %v904 = vadd.f32 %v893, %v900
  %v905 = vadd.f32 %v894, %v900
  %v906 = vadd.f32 %v895, %v900
  %v907 = vadd.f32 %v896, %v900
  %v908 = vmax.f32 %v902, 0.0
  %v909 = vmax.f32 %v903, 0.0
  %v910 = vmax.f32 %v904, 0.0
  %v911 = vmax.f32 %v905, 0.0
  %v912 = vmax.f32 %v906, 0.0
  %v913 = vmax.f32 %v907, 0.0
  %v914 = vmul.f32 %v908, %v818
  %v915 = vmul.f32 %v909, %v819
  %v916 = vmul.f32 %v910, %v820
  %v917 = vmul.f32 %v911, %v821
  %v918 = vmul.f32 %v912, %v822
  %v919 = vmul.f32 %v913, %v823
  %920 = vrot.lane.b32.xlu0 %v914, 19
  %v921 = vpop.permute.xlu0 %920
  %922 = vrot.lane.b32.xlu0 %v915, 19
  %v923 = vpop.permute.xlu0 %922
  %924 = vrot.lane.b32.xlu0 %v916, 19
  %v925 = vpop.permute.xlu0 %924
  %926 = vrot.lane.b32.xlu0 %v917, 19
  %v927 = vpop.permute.xlu0 %926
  %928 = vrot.lane.b32.xlu0 %v918, 19
  %v929 = vpop.permute.xlu0 %928
  %930 = vrot.lane.b32.xlu0 %v919, 19
  %v931 = vpop.permute.xlu0 %930
  %v932 = vsel %vm65, %v929, %v931
  %v933 = vsel %vm65, %v927, %v929
  %v934 = vsel %vm65, %v925, %v927
  %v935 = vsel %vm65, %v923, %v925
  %v936 = vsel %vm65, %v921, %v923
  %v937 = vsel %vm65, %v931, %v921
  %938 = vst [vmem:[#allocation2] sm:$0xff] %v937
  %939 = vst [vmem:[#allocation2 + $0x8] sm:$0xff] %v936
  %940 = vst [vmem:[#allocation2 + $0x10] sm:$0xff] %v935
  %941 = vst [vmem:[#allocation2 + $0x18] sm:$0xff] %v934
  %942 = vst [vmem:[#allocation2 + $0x20] sm:$0xff] %v933
  %943 = vst [vmem:[#allocation2 + $0x28] sm:$0xff] %v932
  %944 = vrot.lane.b32.xlu0 %v914, 18
  %v945 = vpop.permute.xlu0 %944
  %946 = vrot.lane.b32.xlu0 %v915, 18
  %v947 = vpop.permute.xlu0 %946
  %948 = vrot.lane.b32.xlu0 %v916, 18
  %v949 = vpop.permute.xlu0 %948
  %950 = vrot.lane.b32.xlu0 %v917, 18
  %v951 = vpop.permute.xlu0 %950
  %952 = vrot.lane.b32.xlu0 %v918, 18
  %v953 = vpop.permute.xlu0 %952
  %954 = vrot.lane.b32.xlu0 %v919, 18
  %v955 = vpop.permute.xlu0 %954
  %v956 = vsel %vm114, %v953, %v955
  %v957 = vsel %vm114, %v951, %v953
  %v958 = vsel %vm114, %v949, %v951
  %v959 = vsel %vm114, %v947, %v949
  %v960 = vsel %vm114, %v945, %v947
  %v961 = vsel %vm114, %v955, %v945
  %962 = vst [vmem:[#allocation2 + $0x30] sm:$0xff] %v961
  %963 = vst [vmem:[#allocation2 + $0x38] sm:$0xff] %v960
  %964 = vst [vmem:[#allocation2 + $0x40] sm:$0xff] %v959
  %965 = vst [vmem:[#allocation2 + $0x48] sm:$0xff] %v958
  %966 = vst [vmem:[#allocation2 + $0x50] sm:$0xff] %v957
  %967 = vst [vmem:[#allocation2 + $0x58] sm:$0xff] %v956
  %968 = vrot.lane.b32.xlu0 %v914, 17
  %v969 = vpop.permute.xlu0 %968
  %970 = vrot.lane.b32.xlu0 %v915, 17
  %v971 = vpop.permute.xlu0 %970
  %972 = vrot.lane.b32.xlu0 %v916, 17
  %v973 = vpop.permute.xlu0 %972
  %974 = vrot.lane.b32.xlu0 %v917, 17
  %v975 = vpop.permute.xlu0 %974
  %976 = vrot.lane.b32.xlu0 %v918, 17
  %v977 = vpop.permute.xlu0 %976
  %978 = vrot.lane.b32.xlu0 %v919, 17
  %v979 = vpop.permute.xlu0 %978
  %v980 = vsel %vm163, %v977, %v979
  %v981 = vsel %vm163, %v975, %v977
  %v982 = vsel %vm163, %v973, %v975
  %v983 = vsel %vm163, %v971, %v973
  %v984 = vsel %vm163, %v969, %v971
  %v985 = vsel %vm163, %v979, %v969
  %986 = vst [vmem:[#allocation2 + $0x60] sm:$0xff] %v985
  %987 = vst [vmem:[#allocation2 + $0x68] sm:$0xff] %v984
  %988 = vst [vmem:[#allocation2 + $0x70] sm:$0xff] %v983
  %989 = vst [vmem:[#allocation2 + $0x78] sm:$0xff] %v982
  %990 = vst [vmem:[#allocation2 + $0x80] sm:$0xff] %v981
  %991 = vst [vmem:[#allocation2 + $0x88] sm:$0xff] %v980
  %992 = vrot.lane.b32.xlu0 %v914, 1
  %v993 = vpop.permute.xlu0 %992
  %994 = vrot.lane.b32.xlu0 %v915, 1
  %v995 = vpop.permute.xlu0 %994
  %996 = vrot.lane.b32.xlu0 %v916, 1
  %v997 = vpop.permute.xlu0 %996
  %998 = vrot.lane.b32.xlu0 %v917, 1
  %v999 = vpop.permute.xlu0 %998
  %1000 = vrot.lane.b32.xlu0 %v918, 1
  %v1001 = vpop.permute.xlu0 %1000
  %1002 = vrot.lane.b32.xlu0 %v919, 1
  %v1003 = vpop.permute.xlu0 %1002
  %v1004 = vsel %vm212, %v1001, %v1003
  %v1005 = vsel %vm212, %v999, %v1001
  %v1006 = vsel %vm212, %v997, %v999
  %v1007 = vsel %vm212, %v995, %v997
  %v1008 = vsel %vm212, %v993, %v995
  %v1009 = vsel %vm212, %v1003, %v993
  %1010 = vst [vmem:[#allocation2 + $0x90] sm:$0xff] %v1009
  %1011 = vst [vmem:[#allocation2 + $0x98] sm:$0xff] %v1008
  %1012 = vst [vmem:[#allocation2 + $0xa0] sm:$0xff] %v1007
  %1013 = vst [vmem:[#allocation2 + $0xa8] sm:$0xff] %v1006
  %1014 = vst [vmem:[#allocation2 + $0xb0] sm:$0xff] %v1005
  %1015 = vst [vmem:[#allocation2 + $0xb8] sm:$0xff] %v1004
  %1016 = vst [vmem:[#allocation2 + $0xc0] sm:$0xff] %v914
  %1017 = vst [vmem:[#allocation2 + $0xc8] sm:$0xff] %v915
  %1018 = vst [vmem:[#allocation2 + $0xd0] sm:$0xff] %v916
  %1019 = vst [vmem:[#allocation2 + $0xd8] sm:$0xff] %v917
  %1020 = vst [vmem:[#allocation2 + $0xe0] sm:$0xff] %v918
  %1021 = vst [vmem:[#allocation2 + $0xe8] sm:$0xff] %v919
  %1022 = vrot.lane.b32.xlu0 %v914, 127
  %v1023 = vpop.permute.xlu0 %1022
  %1024 = vrot.lane.b32.xlu0 %v915, 127
  %v1025 = vpop.permute.xlu0 %1024
  %1026 = vrot.lane.b32.xlu0 %v916, 127
  %v1027 = vpop.permute.xlu0 %1026
  %1028 = vrot.lane.b32.xlu0 %v917, 127
  %v1029 = vpop.permute.xlu0 %1028
  %1030 = vrot.lane.b32.xlu0 %v918, 127
  %v1031 = vpop.permute.xlu0 %1030
  %1032 = vrot.lane.b32.xlu0 %v919, 127
  %v1033 = vpop.permute.xlu0 %1032
  %v1034 = vsel %vm273, %v1031, %v1033
  %v1035 = vsel %vm273, %v1029, %v1031
  %v1036 = vsel %vm273, %v1027, %v1029
  %v1037 = vsel %vm273, %v1025, %v1027
  %v1038 = vsel %vm273, %v1023, %v1025
  %v1039 = vsel %vm273, %v1033, %v1023
  %1040 = vst [vmem:[#allocation2 + $0xf0] sm:$0xff] %v1038
  %1041 = vst [vmem:[#allocation2 + $0xf8] sm:$0xff] %v1037
  %1042 = vst [vmem:[#allocation2 + $0x100] sm:$0xff] %v1036
  %1043 = vst [vmem:[#allocation2 + $0x108] sm:$0xff] %v1035
  %1044 = vst [vmem:[#allocation2 + $0x110] sm:$0xff] %v1034
  %1045 = vst [vmem:[#allocation2 + $0x118] sm:$0xff] %v1039
  %1046 = vrot.lane.b32.xlu0 %v914, 111
  %v1047 = vpop.permute.xlu0 %1046
  %1048 = vrot.lane.b32.xlu0 %v915, 111
  %v1049 = vpop.permute.xlu0 %1048
  %1050 = vrot.lane.b32.xlu0 %v916, 111
  %v1051 = vpop.permute.xlu0 %1050
  %1052 = vrot.lane.b32.xlu0 %v917, 111
  %v1053 = vpop.permute.xlu0 %1052
  %1054 = vrot.lane.b32.xlu0 %v918, 111
  %v1055 = vpop.permute.xlu0 %1054
  %1056 = vrot.lane.b32.xlu0 %v919, 111
  %v1057 = vpop.permute.xlu0 %1056
  %v1058 = vsel %vm322, %v1055, %v1057
  %v1059 = vsel %vm322, %v1053, %v1055
  %v1060 = vsel %vm322, %v1051, %v1053
  %v1061 = vsel %vm322, %v1049, %v1051
  %v1062 = vsel %vm322, %v1047, %v1049
  %v1063 = vsel %vm322, %v1057, %v1047
  %1064 = vst [vmem:[#allocation2 + $0x120] sm:$0xff] %v1062
  %1065 = vst [vmem:[#allocation2 + $0x128] sm:$0xff] %v1061
  %1066 = vst [vmem:[#allocation2 + $0x130] sm:$0xff] %v1060
  %1067 = vst [vmem:[#allocation2 + $0x138] sm:$0xff] %v1059
  %1068 = vst [vmem:[#allocation2 + $0x140] sm:$0xff] %v1058
  %1069 = vst [vmem:[#allocation2 + $0x148] sm:$0xff] %v1063
  %1070 = vrot.lane.b32.xlu0 %v914, 110
  %v1071 = vpop.permute.xlu0 %1070
  %1072 = vrot.lane.b32.xlu0 %v915, 110
  %v1073 = vpop.permute.xlu0 %1072
  %1074 = vrot.lane.b32.xlu0 %v916, 110
  %v1075 = vpop.permute.xlu0 %1074
  %1076 = vrot.lane.b32.xlu0 %v917, 110
  %v1077 = vpop.permute.xlu0 %1076
  %1078 = vrot.lane.b32.xlu0 %v918, 110
  %v1079 = vpop.permute.xlu0 %1078
  %1080 = vrot.lane.b32.xlu0 %v919, 110
  %v1081 = vpop.permute.xlu0 %1080
  %v1082 = vsel %vm371, %v1079, %v1081
  %v1083 = vsel %vm371, %v1077, %v1079
  %v1084 = vsel %vm371, %v1075, %v1077
  %v1085 = vsel %vm371, %v1073, %v1075
  %v1086 = vsel %vm371, %v1071, %v1073
  %v1087 = vsel %vm371, %v1081, %v1071
  %1088 = vst [vmem:[#allocation2 + $0x150] sm:$0xff] %v1086
  %1089 = vst [vmem:[#allocation2 + $0x158] sm:$0xff] %v1085
  %1090 = vst [vmem:[#allocation2 + $0x160] sm:$0xff] %v1084
  %1091 = vst [vmem:[#allocation2 + $0x168] sm:$0xff] %v1083
  %1092 = vst [vmem:[#allocation2 + $0x170] sm:$0xff] %v1082
  %1093 = vst [vmem:[#allocation2 + $0x178] sm:$0xff] %v1087
  %1094 = vrot.lane.b32.xlu0 %v914, 109
  %v1095 = vpop.permute.xlu0 %1094
  %1096 = vrot.lane.b32.xlu0 %v915, 109
  %v1097 = vpop.permute.xlu0 %1096
  %1098 = vrot.lane.b32.xlu0 %v916, 109
  %v1099 = vpop.permute.xlu0 %1098
  %1100 = vrot.lane.b32.xlu0 %v917, 109
  %v1101 = vpop.permute.xlu0 %1100
  %1102 = vrot.lane.b32.xlu0 %v918, 109
  %v1103 = vpop.permute.xlu0 %1102
  %1104 = vrot.lane.b32.xlu0 %v919, 109
  %v1105 = vpop.permute.xlu0 %1104
  %v1106 = vsel %vm420, %v1103, %v1105
  %v1107 = vsel %vm420, %v1101, %v1103
  %v1108 = vsel %vm420, %v1099, %v1101
  %v1109 = vsel %vm420, %v1097, %v1099
  %v1110 = vsel %vm420, %v1095, %v1097
  %v1111 = vsel %vm420, %v1105, %v1095
  %1112 = vst [vmem:[#allocation2 + $0x180] sm:$0xff] %v1110
  %1113 = vst [vmem:[#allocation2 + $0x188] sm:$0xff] %v1109
  %1114 = vst [vmem:[#allocation2 + $0x190] sm:$0xff] %v1108
  %1115 = vst [vmem:[#allocation2 + $0x198] sm:$0xff] %v1107
  %1116 = vst [vmem:[#allocation2 + $0x1a0] sm:$0xff] %v1106
  %1117 = vst [vmem:[#allocation2 + $0x1a8] sm:$0xff] %v1111
  %v1118 = vld [vmem:[%s7] sm:$0xff]
  %v1119 = vld [vmem:[#allocation2] sm:$0xff]
  %v1120 = vld [vmem:[#allocation2 + $0x8] sm:$0xff]
  %v1121 = vld [vmem:[#allocation2 + $0x10] sm:$0xff]
  %v1122 = vld [vmem:[#allocation2 + $0x18] sm:$0xff]
  %v1123 = vld [vmem:[#allocation2 + $0x20] sm:$0xff]
  %v1124 = vld [vmem:[#allocation2 + $0x28] sm:$0xff]
  %v1125 = vld [vmem:[#allocation2 + $0x30] sm:$0xff]
  %v1126 = vld [vmem:[#allocation2 + $0x38] sm:$0xff]
  %v1127 = vld [vmem:[#allocation2 + $0x40] sm:$0xff]
  %v1128 = vld [vmem:[#allocation2 + $0x48] sm:$0xff]
  %v1129 = vld [vmem:[#allocation2 + $0x50] sm:$0xff]
  %v1130 = vld [vmem:[#allocation2 + $0x58] sm:$0xff]
  %v1131 = vld [vmem:[#allocation2 + $0x60] sm:$0xff]
  %v1132 = vld [vmem:[#allocation2 + $0x68] sm:$0xff]
  %v1133 = vld [vmem:[#allocation2 + $0x70] sm:$0xff]
  %v1134 = vld [vmem:[#allocation2 + $0x78] sm:$0xff]
  %v1135 = vld [vmem:[#allocation2 + $0x80] sm:$0xff]
  %v1136 = vld [vmem:[#allocation2 + $0x88] sm:$0xff]
  %v1137 = vld [vmem:[#allocation2 + $0x90] sm:$0xff]
  %v1138 = vld [vmem:[#allocation2 + $0x98] sm:$0xff]
  %v1139 = vld [vmem:[#allocation2 + $0xa0] sm:$0xff]
  %v1140 = vld [vmem:[#allocation2 + $0xa8] sm:$0xff]
  %v1141 = vld [vmem:[#allocation2 + $0xb0] sm:$0xff]
  %v1142 = vld [vmem:[#allocation2 + $0xb8] sm:$0xff]
  %v1143 = vld [vmem:[#allocation2 + $0xc0] sm:$0xff]
  %v1144 = vld [vmem:[#allocation2 + $0xc8] sm:$0xff]
  %v1145 = vld [vmem:[#allocation2 + $0xd0] sm:$0xff]
  %v1146 = vld [vmem:[#allocation2 + $0xd8] sm:$0xff]
  %v1147 = vld [vmem:[#allocation2 + $0xe0] sm:$0xff]
  %v1148 = vld [vmem:[#allocation2 + $0xe8] sm:$0xff]
  %v1149 = vld [vmem:[#allocation2 + $0xf0] sm:$0xff]
  %v1150 = vld [vmem:[#allocation2 + $0xf8] sm:$0xff]
  %v1151 = vld [vmem:[#allocation2 + $0x100] sm:$0xff]
  %v1152 = vld [vmem:[#allocation2 + $0x108] sm:$0xff]
  %v1153 = vld [vmem:[#allocation2 + $0x110] sm:$0xff]
  %v1154 = vld [vmem:[#allocation2 + $0x118] sm:$0xff]
  %v1155 = vld [vmem:[#allocation2 + $0x120] sm:$0xff]
  %v1156 = vld [vmem:[#allocation2 + $0x128] sm:$0xff]
  %v1157 = vld [vmem:[#allocation2 + $0x130] sm:$0xff]
  %v1158 = vld [vmem:[#allocation2 + $0x138] sm:$0xff]
  %v1159 = vld [vmem:[#allocation2 + $0x140] sm:$0xff]
  %v1160 = vld [vmem:[#allocation2 + $0x148] sm:$0xff]
  %v1161 = vld [vmem:[#allocation2 + $0x150] sm:$0xff]
  %v1162 = vld [vmem:[#allocation2 + $0x158] sm:$0xff]
  %v1163 = vld [vmem:[#allocation2 + $0x160] sm:$0xff]
  %v1164 = vld [vmem:[#allocation2 + $0x168] sm:$0xff]
  %v1165 = vld [vmem:[#allocation2 + $0x170] sm:$0xff]
  %v1166 = vld [vmem:[#allocation2 + $0x178] sm:$0xff]
  %v1167 = vld [vmem:[#allocation2 + $0x180] sm:$0xff]
  %v1168 = vld [vmem:[#allocation2 + $0x188] sm:$0xff]
  %v1169 = vld [vmem:[#allocation2 + $0x190] sm:$0xff]
  %v1170 = vld [vmem:[#allocation2 + $0x198] sm:$0xff]
  %v1171 = vld [vmem:[#allocation2 + $0x1a0] sm:$0xff]
  %v1172 = vld [vmem:[#allocation2 + $0x1a8] sm:$0xff]
  %v1173 = vld [vmem:[%s8] sm:$0xff]
  %1175 = vset.pattern.permute.xlu0 0
  %1176 = vperm.xlu0 %1175, %v1173
  %v1177 = vpop.permute.xlu0 %1176
  %vm1179 = vcmask 588800
  %v1181 = vsel %vm1179, %v1118, 0
  %1183 = vmatpush.msra.mxu0 0.0
  %1184 = vmatpush.msra.mxu0 0.0
  %1185 = vmatpush.msra.mxu0 0.0
  %1186 = vmatpush.msra.mxu0 0.0
  %1187 = vmatpush.msra.mxu0 0.0
  %1188 = vmatpush.msra.mxu0 0.0
  %1189 = vmatpush.msra.mxu0 0.0
  %1190 = vmatpush.msra.mxu0 %v1167
  %1191 = vmatpush.msra.mxu0 %v1161
  %1192 = vmatpush.msra.mxu0 %v1155
  %1193 = vmatpush.msra.mxu0 %v1149
  %1194 = vmatpush.msra.mxu0 %v1143
  %1195 = vmatpush.msra.mxu0 %v1137
  %1196 = vmatpush.msra.mxu0 %v1131
  %1197 = vmatpush.msra.mxu0 %v1125
  %1198 = vmatpush.msra.mxu0 %v1119
  %1199 = vmatmul.f32.gmra.mxu0 %v1181
  %v1200 = vpop.f32.mrf.mxu0
  %v1201 = vadd.f32 %v1177, %v1200
  %1202 = vdwg.mxu0
  %1203 = vmatpush.msra.mxu0 0.0
  %1204 = vmatpush.msra.mxu0 0.0
  %1205 = vmatpush.msra.mxu0 0.0
  %1206 = vmatpush.msra.mxu0 0.0
  %1207 = vmatpush.msra.mxu0 0.0
  %1208 = vmatpush.msra.mxu0 0.0
  %1209 = vmatpush.msra.mxu0 0.0
  %1210 = vmatpush.msra.mxu0 %v1168
  %1211 = vmatpush.msra.mxu0 %v1162
  %1212 = vmatpush.msra.mxu0 %v1156
  %1213 = vmatpush.msra.mxu0 %v1150
  %1214 = vmatpush.msra.mxu0 %v1144
  %1215 = vmatpush.msra.mxu0 %v1138
  %1216 = vmatpush.msra.mxu0 %v1132
  %1217 = vmatpush.msra.mxu0 %v1126
  %1218 = vmatpush.msra.mxu0 %v1120
  %1219 = vmatmul.f32.gmra.mxu0 %v1181
  %v1220 = vpop.f32.mrf.mxu0
  %v1221 = vadd.f32 %v1177, %v1220
  %1222 = vdwg.mxu0
  %1223 = vmatpush.msra.mxu0 0.0
  %1224 = vmatpush.msra.mxu0 0.0
  %1225 = vmatpush.msra.mxu0 0.0
  %1226 = vmatpush.msra.mxu0 0.0
  %1227 = vmatpush.msra.mxu0 0.0
  %1228 = vmatpush.msra.mxu0 0.0
  %1229 = vmatpush.msra.mxu0 0.0
  %1230 = vmatpush.msra.mxu0 %v1169
  %1231 = vmatpush.msra.mxu0 %v1163
  %1232 = vmatpush.msra.mxu0 %v1157
  %1233 = vmatpush.msra.mxu0 %v1151
  %1234 = vmatpush.msra.mxu0 %v1145
  %1235 = vmatpush.msra.mxu0 %v1139
  %1236 = vmatpush.msra.mxu0 %v1133
  %1237 = vmatpush.msra.mxu0 %v1127
  %1238 = vmatpush.msra.mxu0 %v1121
  %1239 = vmatmul.f32.gmra.mxu0 %v1181
  %v1240 = vpop.f32.mrf.mxu0
  %v1241 = vadd.f32 %v1177, %v1240
  %1242 = vdwg.mxu0
  %1243 = vmatpush.msra.mxu0 0.0
  %1244 = vmatpush.msra.mxu0 0.0
  %1245 = vmatpush.msra.mxu0 0.0
  %1246 = vmatpush.msra.mxu0 0.0
  %1247 = vmatpush.msra.mxu0 0.0
  %1248 = vmatpush.msra.mxu0 0.0
  %1249 = vmatpush.msra.mxu0 0.0
  %1250 = vmatpush.msra.mxu0 %v1170
  %1251 = vmatpush.msra.mxu0 %v1164
  %1252 = vmatpush.msra.mxu0 %v1158
  %1253 = vmatpush.msra.mxu0 %v1152
  %1254 = vmatpush.msra.mxu0 %v1146
  %1255 = vmatpush.msra.mxu0 %v1140
  %1256 = vmatpush.msra.mxu0 %v1134
  %1257 = vmatpush.msra.mxu0 %v1128
  %1258 = vmatpush.msra.mxu0 %v1122
  %1259 = vmatmul.f32.gmra.mxu0 %v1181
  %v1260 = vpop.f32.mrf.mxu0
  %v1261 = vadd.f32 %v1177, %v1260
  %1262 = vdwg.mxu0
  %1263 = vmatpush.msra.mxu0 0.0
  %1264 = vmatpush.msra.mxu0 0.0
  %1265 = vmatpush.msra.mxu0 0.0
  %1266 = vmatpush.msra.mxu0 0.0
  %1267 = vmatpush.msra.mxu0 0.0
  %1268 = vmatpush.msra.mxu0 0.0
  %1269 = vmatpush.msra.mxu0 0.0
  %1270 = vmatpush.msra.mxu0 %v1171
  %1271 = vmatpush.msra.mxu0 %v1165
  %1272 = vmatpush.msra.mxu0 %v1159
  %1273 = vmatpush.msra.mxu0 %v1153
  %1274 = vmatpush.msra.mxu0 %v1147
  %1275 = vmatpush.msra.mxu0 %v1141
  %1276 = vmatpush.msra.mxu0 %v1135
  %1277 = vmatpush.msra.mxu0 %v1129
  %1278 = vmatpush.msra.mxu0 %v1123
  %1279 = vmatmul.f32.gmra.mxu0 %v1181
  %v1280 = vpop.f32.mrf.mxu0
  %v1281 = vadd.f32 %v1177, %v1280
  %1282 = vdwg.mxu0
  %1283 = vmatpush.msra.mxu0 0.0
  %1284 = vmatpush.msra.mxu0 0.0
  %1285 = vmatpush.msra.mxu0 0.0
  %1286 = vmatpush.msra.mxu0 0.0
  %1287 = vmatpush.msra.mxu0 0.0
  %1288 = vmatpush.msra.mxu0 0.0
  %1289 = vmatpush.msra.mxu0 0.0
  %1290 = vmatpush.msra.mxu0 %v1172
  %1291 = vmatpush.msra.mxu0 %v1166
  %1292 = vmatpush.msra.mxu0 %v1160
  %1293 = vmatpush.msra.mxu0 %v1154
  %1294 = vmatpush.msra.mxu0 %v1148
  %1295 = vmatpush.msra.mxu0 %v1142
  %1296 = vmatpush.msra.mxu0 %v1136
  %1297 = vmatpush.msra.mxu0 %v1130
  %1298 = vmatpush.msra.mxu0 %v1124
  %1299 = vmatmul.f32.gmra.mxu0 %v1181
  %v1300 = vpop.f32.mrf.mxu0
  %v1301 = vadd.f32 %v1177, %v1300
  %1302 = vdwg.mxu0
  %v1303 = vmul.f32 %v1201, %v818
  %v1304 = vmul.f32 %v1221, %v819
  %v1305 = vmul.f32 %v1241, %v820
  %v1306 = vmul.f32 %v1261, %v821
  %v1307 = vmul.f32 %v1281, %v822
  %v1308 = vmul.f32 %v1301, %v823
  %v1309 = vadd.f32 %v1303, %v1304
  %v1310 = vadd.f32 %v1309, %v1305
  %v1311 = vadd.f32 %v1310, %v1306
  %v1312 = vadd.f32 %v1311, %v1307
  %v1313 = vadd.f32 %v1312, %v1308
  %1314 = vadd.xlane.f32.xlu0 %v1313
  %v1315 = vpop.xlane.xlu0 %1314
  %v1316 = vmul.f32 %v1315, 0.001953125
  %v1317 = vsub.f32 %v1201, %v1316
  %v1318 = vsub.f32 %v1221, %v1316
  %v1319 = vsub.f32 %v1241, %v1316
  %v1320 = vsub.f32 %v1261, %v1316
  %v1321 = vsub.f32 %v1281, %v1316
  %v1322 = vsub.f32 %v1301, %v1316
  %v1323 = vmul.f32 %v1317, %v818
  %v1324 = vmul.f32 %v1318, %v819
  %v1325 = vmul.f32 %v1319, %v820
  %v1326 = vmul.f32 %v1320, %v821
  %v1327 = vmul.f32 %v1321, %v822
  %v1328 = vmul.f32 %v1322, %v823
  %v1329 = vmul.f32 %v1323, %v1323
  %v1330 = vmul.f32 %v1324, %v1324
  %v1331 = vmul.f32 %v1325, %v1325
  %v1332 = vmul.f32 %v1326, %v1326
  %v1333 = vmul.f32 %v1327, %v1327
  %v1334 = vmul.f32 %v1328, %v1328
  %v1335 = vadd.f32 %v1329, %v1330
  %v1336 = vadd.f32 %v1335, %v1331
  %v1337 = vadd.f32 %v1336, %v1332
  %v1338 = vadd.f32 %v1337, %v1333
  %v1339 = vadd.f32 %v1338, %v1334
  %1340 = vadd.xlane.f32.xlu0 %v1339
  %v1341 = vpop.xlane.xlu0 %1340
  %v1342 = vmul.f32 %v1341, 0.001953125
  %v1343 = vld [vmem:[%s9] sm:$0xff]
  %v1344 = vadd.f32 %v1342, 1e-05
  %v1345 = vrsqrt.pop %v1344
  %v1346 = vmul.f32 %v1345, %v1344
  %v1347 = vmul.f32 %v1346, %v1345
  %v1348 = vmul.f32 0.5, %v1347
  %v1349 = vsub.f32 1.5, %v1348
  %v1350 = vmul.f32 %v1345, %v1349
  %vm1351 = vweird.f32 %v1344
  %vm1352 = vweird.f32 %v1345
  %vm1353 = vmor %vm1351, %vm1352
  %v1354 = vsel %vm1353, %v1345, %v1350
  %v1355 = vmul.f32 %v1343, %v1354
  %v1356 = vld [vmem:[%s10] sm:$0xff]
  %v1357 = vmul.f32 %v1316, %v1355
  %v1358 = vsub.f32 %v1356, %v1357
  %1360 = vset.pattern.permute.xlu0 0
  %1361 = vperm.xlu0 %1360, %v1355
  %v1362 = vpop.permute.xlu0 %1361
  %v1364 = vmul.f32 %v1201, %v1362
  %v1365 = vmul.f32 %v1221, %v1362
  %v1366 = vmul.f32 %v1241, %v1362
  %v1367 = vmul.f32 %v1261, %v1362
  %v1368 = vmul.f32 %v1281, %v1362
  %v1369 = vmul.f32 %v1301, %v1362
  %1371 = vset.pattern.permute.xlu0 0
  %1372 = vperm.xlu0 %1371, %v1358
  %v1373 = vpop.permute.xlu0 %1372
  %v1375 = vadd.f32 %v1364, %v1373
  %v1376 = vadd.f32 %v1365, %v1373
  %v1377 = vadd.f32 %v1366, %v1373
  %v1378 = vadd.f32 %v1367, %v1373
  %v1379 = vadd.f32 %v1368, %v1373
  %v1380 = vadd.f32 %v1369, %v1373
  %v1381 = vmax.f32 %v1375, 0.0
  %v1382 = vmax.f32 %v1376, 0.0
  %v1383 = vmax.f32 %v1377, 0.0
  %v1384 = vmax.f32 %v1378, 0.0
  %v1385 = vmax.f32 %v1379, 0.0
  %v1386 = vmax.f32 %v1380, 0.0
  %1387 = vst [vmem:[%s11] sm:$0xff] %v1381
  %1388 = vst [vmem:[%s11 + $0x8] sm:$0xff] %v1382
  %1389 = vst [vmem:[%s11 + $0x10] sm:$0xff] %v1383
  %1390 = vst [vmem:[%s11 + $0x18] sm:$0xff] %v1384
  %1391 = vst [vmem:[%s11 + $0x20] sm:$0xff] %v1385
  %1392 = vst [vmem:[%s11 + $0x28] sm:$0xff] %v1386
  // Predicated region
  $region46: #{upconv_forward.1} parent=0 // pred_check
    _
  $region47: #{upconv_forward.1} parent=0 // pred_check_branch
    %1394 = sbr.rel (0) target = $region49
  $region48: #{upconv_forward.1} parent=0 // pred_region
    _
  $region49: #{upconv_forward.1} parent=0 // pred_fallthru
    _
  // Predicated region
  $region50: #{upconv_forward.1} parent=0 // pred_check
    _
  $region51: #{upconv_forward.1} parent=0 // pred_check_branch
    %1396 = sbr.rel (0) target = $region53
  $region52: #{upconv_forward.1} parent=0 // pred_region
    _
  $region53: #{upconv_forward.1} parent=0 // pred_fallthru
    _

</llo_original>
